<compile_context>
chip_gen: v6e
topology: v6e:2x2x1
jax: 0.10.0
libtpu: 0.0.40
codegen_flags: <defaults>
</compile_context>

<pallas_src>
import functools

import jax
import jax.numpy as jnp
from jax import lax
from jax.experimental import pallas as pl
from jax.experimental.pallas import tpu as pltpu


NEG_BIG = -1e30  # large finite negative for causal masking (avoids -inf NaNs)


# -----------------------------------------------------------------------------
# Fused Q/K/V projection kernel:  (tp, C) @ (C, 3*Hp)  ->  q, k, v row tiles.
# -----------------------------------------------------------------------------
def _qkv_proj_kernel(x_ref, w_ref, q_ref, k_ref, v_ref, *, hp):
    y = jnp.dot(x_ref[0], w_ref[...], preferred_element_type=jnp.float32)
    q_ref[0] = y[:, :hp].astype(q_ref.dtype)
    k_ref[0] = y[:, hp:2 * hp].astype(k_ref.dtype)
    v_ref[0] = y[:, 2 * hp:].astype(v_ref.dtype)


def _project_qkv(x_bf16, w_qkv_bf16, *, hp, tp):
    B, T, C = x_bf16.shape
    kernel = functools.partial(_qkv_proj_kernel, hp=hp)
    out_shape = jax.ShapeDtypeStruct((B, T, hp), jnp.bfloat16)
    return pl.pallas_call(
        kernel,
        out_shape=(out_shape, out_shape, out_shape),
        grid_spec=pltpu.PrefetchScalarGridSpec(
            num_scalar_prefetch=0,
            grid=(B, T // tp),
            in_specs=[
                pl.BlockSpec((1, tp, C), lambda b, i: (b, i, 0)),       # x rows
                pl.BlockSpec((C, 3 * hp), lambda b, i: (0, 0)),         # [Wq|Wk|Wv]
            ],
            out_specs=(
                pl.BlockSpec((1, tp, hp), lambda b, i: (b, i, 0)),
                pl.BlockSpec((1, tp, hp), lambda b, i: (b, i, 0)),
                pl.BlockSpec((1, tp, hp), lambda b, i: (b, i, 0)),
            ),
        ),
        compiler_params=pltpu.CompilerParams(
            dimension_semantics=("parallel", "parallel"),
            vmem_limit_bytes=32 * 1024 * 1024,
        ),
    )(x_bf16, w_qkv_bf16)


# -----------------------------------------------------------------------------
# Flash-style causal attention kernel (online softmax over kv tiles).
# -----------------------------------------------------------------------------
def _flash_head_kernel(q_ref, k_ref, v_ref, o_ref, m_scr, l_scr, acc_scr):
    qi = pl.program_id(1)
    ki = pl.program_id(2)
    tq = q_ref.shape[1]
    tk = k_ref.shape[1]
    q_start = qi * tq
    kv_start = ki * tk

    @pl.when(ki == 0)
    def _init():
        m_scr[...] = jnp.full_like(m_scr, NEG_BIG)
        l_scr[...] = jnp.zeros_like(l_scr)
        acc_scr[...] = jnp.zeros_like(acc_scr)

    # Skip kv tiles that lie entirely above the causal diagonal.
    @pl.when(kv_start <= q_start + tq - 1)
    def _compute():
        q = q_ref[0]          # (tq, Hp) bf16, 1/sqrt(H) pre-folded into Wq
        k = k_ref[0]          # (tk, Hp) bf16
        v = v_ref[0]          # (tk, Hp) bf16

        # q @ k^T without materializing a transpose: contract last dims.
        s = lax.dot_general(q, k, (((1,), (1,)), ((), ())),
                            preferred_element_type=jnp.float32)   # (tq, tk) f32

        def update(s_eff):
            m_prev = m_scr[...]
            m_new = jnp.maximum(m_prev, jnp.max(s_eff, axis=-1, keepdims=True))
            alpha = jnp.exp(m_prev - m_new)
            p = jnp.exp(s_eff - m_new)                            # f32 (EUP)
            l_scr[...] = alpha * l_scr[...] + jnp.sum(p, axis=-1, keepdims=True)
            acc_scr[...] = alpha * acc_scr[...] + jnp.dot(
                p.astype(v.dtype), v, preferred_element_type=jnp.float32)
            m_scr[...] = m_new

        on_diag = kv_start + tk - 1 > q_start   # tile straddles the diagonal

        @pl.when(on_diag)
        def _masked():
            rows = q_start + lax.broadcasted_iota(jnp.int32, (tq, tk), 0)
            cols = kv_start + lax.broadcasted_iota(jnp.int32, (tq, tk), 1)
            update(jnp.where(cols <= rows, s, NEG_BIG))

        @pl.when(jnp.logical_not(on_diag))
        def _unmasked():
            update(s)

    @pl.when(ki == pl.num_programs(2) - 1)
    def _finalize():
        inv_l = pl.reciprocal(l_scr[...], approx=True)  # EUP slot, nearly free
        o_ref[0] = (acc_scr[...] * inv_l).astype(o_ref.dtype)


def head_forward(x, w_key, w_query, w_value, *, tq=128, tk=256):
    """x: (B, T, C); w_*: (head_size, n_embd) PyTorch Linear weights (no bias).
    Returns (B, T, head_size)."""
    B, T, C = x.shape
    H = w_key.shape[0]
    assert w_key.shape == w_query.shape == w_value.shape == (H, C)

    tq = min(tq, T)
    tk = min(tk, T)
    assert T % tq == 0 and T % tk == 0, "T must be divisible by the tile sizes"
    assert tq % 8 == 0 and tk % 8 == 0 and C % 128 == 0

    Hp = max(128, ((H + 127) // 128) * 128)   # lane-dense head dim
    scale = float(H) ** -0.5                  # true head size, not the padded one

    def pad_t(w, s=1.0):
        wt = jnp.asarray(w, jnp.float32).T * s            # (C, H)
        return jnp.pad(wt, ((0, 0), (0, Hp - H)))         # (C, Hp), zero columns

    # Fused [Wq*scale | Wk | Wv] in bf16; scale folded into the query weight.
    w_qkv = jnp.concatenate(
        [pad_t(w_query, scale), pad_t(w_key), pad_t(w_value)], axis=1
    ).astype(jnp.bfloat16)                                # (C, 3*Hp)

    # Projections hoisted out of the kv loop: one matmul per row tile.
    q, k, v = _project_qkv(x.astype(jnp.bfloat16), w_qkv, hp=Hp, tp=tq)

    def kv_index_map(b, qi, ki):
        # Clamp so causally-skipped kv tiles repeat the previous block index,
        # which makes Pallas skip their HBM->VMEM DMA entirely.
        last_visible = (qi * tq + tq - 1) // tk
        return (b, jnp.minimum(ki, last_visible), 0)

    out_padded = pl.pallas_call(
        _flash_head_kernel,
        out_shape=jax.ShapeDtypeStruct((B, T, Hp), x.dtype),
        grid_spec=pltpu.PrefetchScalarGridSpec(
            num_scalar_prefetch=0,
            grid=(B, T // tq, T // tk),
            in_specs=[
                pl.BlockSpec((1, tq, Hp), lambda b, qi, ki: (b, qi, 0)),  # q rows
                pl.BlockSpec((1, tk, Hp), kv_index_map),                  # k rows
                pl.BlockSpec((1, tk, Hp), kv_index_map),                  # v rows
            ],
            out_specs=pl.BlockSpec((1, tq, Hp), lambda b, qi, ki: (b, qi, 0)),
            scratch_shapes=[
                pltpu.VMEM((tq, 1), jnp.float32),    # running max
                pltpu.VMEM((tq, 1), jnp.float32),    # running denominator
                pltpu.VMEM((tq, Hp), jnp.float32),   # output accumulator
            ],
        ),
        compiler_params=pltpu.CompilerParams(
            dimension_semantics=("parallel", "parallel", "arbitrary"),
            vmem_limit_bytes=32 * 1024 * 1024,
        ),
    )(q, k, v)

    return out_padded[..., :H]


def head_reference(x, w_key, w_query, w_value):
    """Pure-JAX f32 reference mirroring the PyTorch forward (eval mode)."""
    k = x @ w_key.T
    q = x @ w_query.T
    v = x @ w_value.T
    scale = k.shape[-1] ** -0.5
    wei = jnp.einsum("btd,bsd->bts", q, k) * scale
    T = x.shape[1]
    tril = jnp.tril(jnp.ones((T, T), dtype=bool))
    wei = jnp.where(tril[None, :, :], wei, -jnp.inf)
    wei = jax.nn.softmax(wei, axis=-1)
    return wei @ v


if __name__ == "__main__":
    # Shapes consistent with the module: n_embd=384, T=block_size=128, head_size=64.
    B, T, C = 2, 128, 384
    head_size = 64

    key = jax.random.PRNGKey(0)
    kx, kk, kq, kv = jax.random.split(key, 4)

    x = jax.random.normal(kx, (B, T, C), dtype=jnp.float32)
    # Deterministic init, PyTorch Linear weight shape: (out_features, in_features)
    bound = 1.0 / (C ** 0.5)
    w_key = jax.random.uniform(kk, (head_size, C), jnp.float32, -bound, bound)
    w_query = jax.random.uniform(kq, (head_size, C), jnp.float32, -bound, bound)
    w_value = jax.random.uniform(kv, (head_size, C), jnp.float32, -bound, bound)

    out = head_forward(x, w_key, w_query, w_value)
    out = jax.block_until_ready(out)

    ref = head_reference(x, w_key, w_query, w_value)
    assert out.shape == (B, T, head_size)
    # bf16 MXU operands (per perf review) => compare with bf16-appropriate tolerance.
    assert jnp.allclose(out, ref, atol=2e-2, rtol=2e-2), (
        "mismatch vs reference: max abs err = "
        f"{float(jnp.max(jnp.abs(out - ref)))}")

    print("KERNEL_OK")
</pallas_src>

<mosaic_0001>
module attributes {stable_mosaic.version = 11 : i64} {
  func.func @_qkv_proj_kernel(%arg0: i32, %arg1: i32, %arg2: memref<1x128x384xbf16, #tpu.memory_space<vmem>>, %arg3: memref<384x384xbf16, #tpu.memory_space<vmem>>, %arg4: memref<1x128x128xbf16, #tpu.memory_space<vmem>>, %arg5: memref<1x128x128xbf16, #tpu.memory_space<vmem>>, %arg6: memref<1x128x128xbf16, #tpu.memory_space<vmem>>) attributes {dimension_semantics = [#tpu.dimension_semantics<parallel>, #tpu.dimension_semantics<parallel>], iteration_bounds = array<i64: 2, 1>, scalar_prefetch = 0 : i64, scratch_operands = 0 : i64, tpu.core_type = #tpu.core_type<tc>, window_params = [{transform_indices = @transform_0, window_bounds = array<i64: 1, 128, 384>}, {pipeline_mode = #tpu.pipeline_mode<synchronous>, transform_indices = @transform_1, window_bounds = array<i64: 384, 384>}, {transform_indices = @transform_2, window_bounds = array<i64: 1, 128, 128>}, {transform_indices = @transform_3, window_bounds = array<i64: 1, 128, 128>}, {transform_indices = @transform_4, window_bounds = array<i64: 1, 128, 128>}]} {
    %c0 = arith.constant 0 : index
    %c0_0 = arith.constant 0 : index
    %c0_1 = arith.constant 0 : index
    %0 = vector.load %arg2[%c0, %c0_0, %c0_1] : memref<1x128x384xbf16, #tpu.memory_space<vmem>>, vector<1x128x384xbf16>
    %1 = vector.shape_cast %0 : vector<1x128x384xbf16> to vector<128x384xbf16>
    %c0_2 = arith.constant 0 : index
    %c0_3 = arith.constant 0 : index
    %2 = vector.load %arg3[%c0_2, %c0_3] : memref<384x384xbf16, #tpu.memory_space<vmem>>, vector<384x384xbf16>
    %cst = arith.constant dense<0.000000e+00> : vector<128x384xf32>
    %3 = tpu.matmul %1, %2, %cst {dimension_numbers = #tpu.dot_dimension_numbers<[1], [0], [0], [1], [0, 0, 1, 1], [], []>} : vector<128x384xbf16>, vector<384x384xbf16>, vector<128x384xf32> -> vector<128x384xf32>
    %4 = vector.extract_strided_slice %3 {offsets = [0, 0], sizes = [128, 128], strides = [1, 1]} : vector<128x384xf32> to vector<128x128xf32>
    %5 = arith.truncf %4 : vector<128x128xf32> to vector<128x128xbf16>
    %c0_4 = arith.constant 0 : index
    %c0_5 = arith.constant 0 : index
    %c0_6 = arith.constant 0 : index
    %6 = vector.load %arg4[%c0_4, %c0_5, %c0_6] : memref<1x128x128xbf16, #tpu.memory_space<vmem>>, vector<1x128x128xbf16>
    %7 = vector.shape_cast %6 : vector<1x128x128xbf16> to vector<128x128xbf16>
    %8 = vector.shape_cast %5 : vector<128x128xbf16> to vector<1x128x128xbf16>
    tpu.vector_store %arg4[%c0_4, %c0_5, %c0_6], %8 {strides = array<i32>} : memref<1x128x128xbf16, #tpu.memory_space<vmem>>, vector<1x128x128xbf16>,
    %9 = vector.extract_strided_slice %3 {offsets = [0, 128], sizes = [128, 128], strides = [1, 1]} : vector<128x384xf32> to vector<128x128xf32>
    %10 = arith.truncf %9 : vector<128x128xf32> to vector<128x128xbf16>
    %c0_7 = arith.constant 0 : index
    %c0_8 = arith.constant 0 : index
    %c0_9 = arith.constant 0 : index
    %11 = vector.load %arg5[%c0_7, %c0_8, %c0_9] : memref<1x128x128xbf16, #tpu.memory_space<vmem>>, vector<1x128x128xbf16>
    %12 = vector.shape_cast %11 : vector<1x128x128xbf16> to vector<128x128xbf16>
    %13 = vector.shape_cast %10 : vector<128x128xbf16> to vector<1x128x128xbf16>
    tpu.vector_store %arg5[%c0_7, %c0_8, %c0_9], %13 {strides = array<i32>} : memref<1x128x128xbf16, #tpu.memory_space<vmem>>, vector<1x128x128xbf16>,
    %14 = vector.extract_strided_slice %3 {offsets = [0, 256], sizes = [128, 128], strides = [1, 1]} : vector<128x384xf32> to vector<128x128xf32>
    %15 = arith.truncf %14 : vector<128x128xf32> to vector<128x128xbf16>
    %c0_10 = arith.constant 0 : index
    %c0_11 = arith.constant 0 : index
    %c0_12 = arith.constant 0 : index
    %16 = vector.load %arg6[%c0_10, %c0_11, %c0_12] : memref<1x128x128xbf16, #tpu.memory_space<vmem>>, vector<1x128x128xbf16>
    %17 = vector.shape_cast %16 : vector<1x128x128xbf16> to vector<128x128xbf16>
    %18 = vector.shape_cast %15 : vector<128x128xbf16> to vector<1x128x128xbf16>
    tpu.vector_store %arg6[%c0_10, %c0_11, %c0_12], %18 {strides = array<i32>} : memref<1x128x128xbf16, #tpu.memory_space<vmem>>, vector<1x128x128xbf16>,
    return
  }
  func.func @transform_0(%arg0: i32, %arg1: i32) -> (i32, i32, i32) {
    %c0_i32 = arith.constant 0 : i32
    %c0_i32_0 = arith.constant 0 : i32
    return %arg0, %arg1, %c0_i32 : i32, i32, i32
  }
  func.func @transform_1(%arg0: i32, %arg1: i32) -> (i32, i32) {
    %c0_i32 = arith.constant 0 : i32
    %c0_i32_0 = arith.constant 0 : i32
    %c0_i32_1 = arith.constant 0 : i32
    return %c0_i32, %c0_i32_0 : i32, i32
  }
  func.func @transform_2(%arg0: i32, %arg1: i32) -> (i32, i32, i32) {
    %c0_i32 = arith.constant 0 : i32
    %c0_i32_0 = arith.constant 0 : i32
    return %arg0, %arg1, %c0_i32 : i32, i32, i32
  }
  func.func @transform_3(%arg0: i32, %arg1: i32) -> (i32, i32, i32) {
    %c0_i32 = arith.constant 0 : i32
    %c0_i32_0 = arith.constant 0 : i32
    return %arg0, %arg1, %c0_i32 : i32, i32, i32
  }
  func.func @transform_4(%arg0: i32, %arg1: i32) -> (i32, i32, i32) {
    %c0_i32 = arith.constant 0 : i32
    %c0_i32_0 = arith.constant 0 : i32
    return %arg0, %arg1, %c0_i32 : i32, i32, i32
  }
}

</mosaic_0001>

<llo_original>
// kernel: tpu_custom_call.1
$region0: #{tpu_custom_call.1}
  #allocation0 [shape = 'u32[]', space=smem, size = 0x4, offset = 0x4, fixed_abs, tag = 'smem constant byte address 0x4 - core index']
  #allocation1 [shape = 'u32[144,128]{1,0:T(1,128)}', space=vmem, size = 0x12000, scoped, tag = 'internal scratch']
  %s0 = inlined_call_operand.hbm [shape: bf16[2,128,384], index: 0, kind: input, shape index: {}]
  %s1 = inlined_call_operand.hbm [shape: bf16[384,384], index: 1, kind: input, shape index: {}]
  %s2 = inlined_call_operand.hbm [shape: bf16[2,128,128], index: 2, kind: output, shape index: {0}]
  %s3 = inlined_call_operand.hbm [shape: bf16[2,128,128], index: 3, kind: output, shape index: {1}]
  %s4 = inlined_call_operand.hbm [shape: bf16[2,128,128], index: 4, kind: output, shape index: {2}]
  %5 = xla_tuple %s2, %s3, %s4
  %s6 = sld [smem:[#allocation0]]
  $region65: #{tpu_custom_call.1} parent=0
    _
  %s8 = ssub.s32 1, %s6
  %s9 = scalar_select 0, %s8, %s6
  $region1: #{tpu_custom_call.1} parent=0
    #allocation2 [shape = 'u8[196608]{0}', space=vmem, size = 0x30000, scoped, tag = 'input window, operand 0']
    #allocation3 [shape = 's32[2]{0}', space=sflag, size = 0x8, scoped, tag = 'scoped memory for tpu_custom_call.1']
    #allocation4 [shape = 's32[2]{0}', space=sflag, size = 0x8, scoped, tag = 'scoped memory for tpu_custom_call.1']
    #allocation5 [shape = 'u8[294912]{0}', space=vmem, size = 0x48000, scoped, tag = 'input window, operand 1, single buffered']
    #allocation6 [shape = 's32[1]{0}', space=sflag, size = 0x4, scoped, tag = 'scoped memory for tpu_custom_call.1']
    #allocation7 [shape = 'u8[65536]{0}', space=vmem, size = 0x10000, scoped, tag = 'output window, operand 0']
    #allocation8 [shape = 'u8[65536]{0}', space=vmem, size = 0x10000, scoped, tag = 'output window, operand 1']
    #allocation9 [shape = 's32[2]{0}', space=sflag, size = 0x8, scoped, tag = 'scoped memory for tpu_custom_call.1']
    #allocation10 [shape = 'u8[65536]{0}', space=vmem, size = 0x10000, scoped, tag = 'output window, operand 2']
    %10 = vsyncpa [#allocation3], 0
    %s11 = scalar_lea.sflag [#allocation3], 1
    %12 = vsyncpa %s11, 0
    %13 = vsyncpa [#allocation6], 0
    %14 = vsyncpa [#allocation4], 0
    %s15 = scalar_lea.sflag [#allocation4], 1
    %16 = vsyncpa %s15, 0
    %17 = vsyncpa [#allocation9], 0
    %s18 = scalar_lea.sflag [#allocation9], 1
    %19 = vsyncpa %s18, 0
    loop: start=0, step=1, limit=4
    $region2: #{tpu_custom_call.1} parent=1 // loop_pre_header
      _
    $region3: #{tpu_custom_call.1} parent=1 // loop_header
      %s21 = sphi 0, %s25
      %p22 = scmp.ge.s32.totalorder %s21, 4
      %s28 = sphi 0, %s40
      %s29 = sphi 0, %s36
      %s30 = sphi 0, %s28
      %s31 = sphi 0, %s29
      %s32 = sphi 0, %s30
      %s33 = sphi 0, %s31
      %s45 = sphi 0, %s47
      %s48 = sphi 0, %s45
      %s49 = sphi 0, %s48
      %s65 = sphi 0, %s49
      %s69 = sphi 0, %s69
      %s71 = sphi 0, %s69
      %s72 = sphi 0, %s71
      %s86 = sphi 0, %s72
      %s94 = sphi 0, %s96
      %s97 = sphi 0, %s94
      %s98 = sphi 0, %s97
      %s114 = sphi 0, %s98
      %s122 = sphi 0, %s124
      %s125 = sphi 0, %s122
      %s126 = sphi 0, %s125
      %s142 = sphi 0, %s126
      %s150 = sphi 0, %s152
      %s153 = sphi 0, %s150
      %s154 = sphi 0, %s153
      %s170 = sphi 0, %s154
    $region4: #{tpu_custom_call.1} parent=1 // loop_header_branch
      %24 = sbr.rel (%p22) target = $region8
    $region5: #{tpu_custom_call.1} parent=1 // loop_body
      %s26 = ssub.s32 %s21, 1
      %s27 = ssub.s32 %s21, 2
      %s34 = sadd.s32 1, %s29
      %p35 = scmp.ge.s32.totalorder %s34, 1
      %s36 = scalar_select %p35, 0, %s34
      %s37 = sadd.s32 1, %s28
      %s38 = scalar_select %p35, %s37, %s28
      %p39 = scmp.ge.s32.totalorder %s38, 2
      %s40 = scalar_select %p39, 0, %s38
      %s41 = ssub.s32 %s28, %s40
      %s42 = ssub.s32 %s29, %s36
      %s43 = sor.u32 %s41, %s42
      %p44 = scmp.eq.s32.totalorder %s43, 0
      %s46 = sadd.s32 %s45, 1
      %s47 = scalar_select %p44, %s45, %s46
      %p50 = pneg %p44
      %p51 = scmp.eq.s32.totalorder %s21, 1
      %p52 = por %p50, %p51
      %p53 = scmp.ne.s32.totalorder %s45, %s48
      %p54 = scmp.eq.s32.totalorder %s21, 0
      %p55 = por %p53, %p54
      %p56 = scmp.ne.s32.totalorder %s45, %s48
      %p57 = scmp.eq.s32.totalorder %s26, 1
      %p58 = por %p56, %p57
      %p59 = scmp.ne.s32.totalorder %s48, %s49
      %p60 = scmp.eq.s32.totalorder %s26, 0
      %p61 = por %p59, %p60
      %p62 = scmp.ne.s32.totalorder %s48, %s49
      %p63 = scmp.eq.s32.totalorder %s27, 1
      %p64 = por %p62, %p63
      %p66 = scmp.ne.s32.totalorder %s49, %s65
      %p67 = scmp.eq.s32.totalorder %s27, 0
      %p68 = por %p66, %p67
      %s70 = sadd.s32 %s69, 1
      %p73 = scmp.eq.s32.totalorder %s21, 1
      %p74 = scmp.ne.s32.totalorder %s69, %s71
      %p75 = scmp.eq.s32.totalorder %s21, 0
      %p76 = por %p74, %p75
      %p77 = scmp.ne.s32.totalorder %s69, %s71
      %p78 = scmp.eq.s32.totalorder %s26, 1
      %p79 = por %p77, %p78
      %p80 = scmp.ne.s32.totalorder %s71, %s72
      %p81 = scmp.eq.s32.totalorder %s26, 0
      %p82 = por %p80, %p81
      %p83 = scmp.ne.s32.totalorder %s71, %s72
      %p84 = scmp.eq.s32.totalorder %s27, 1
      %p85 = por %p83, %p84
      %p87 = scmp.ne.s32.totalorder %s72, %s86
      %p88 = scmp.eq.s32.totalorder %s27, 0
      %p89 = por %p87, %p88
      %s90 = ssub.s32 %s28, %s40
      %s91 = ssub.s32 %s29, %s36
      %s92 = sor.u32 %s90, %s91
      %p93 = scmp.eq.s32.totalorder %s92, 0
      %s95 = sadd.s32 %s94, 1
      %s96 = scalar_select %p93, %s94, %s95
      %p99 = pneg %p93
      %p100 = scmp.eq.s32.totalorder %s21, 1
      %p101 = por %p99, %p100
      %p102 = scmp.ne.s32.totalorder %s94, %s97
      %p103 = scmp.eq.s32.totalorder %s21, 0
      %p104 = por %p102, %p103
      %p105 = scmp.ne.s32.totalorder %s94, %s97
      %p106 = scmp.eq.s32.totalorder %s26, 1
      %p107 = por %p105, %p106
      %p108 = scmp.ne.s32.totalorder %s97, %s98
      %p109 = scmp.eq.s32.totalorder %s26, 0
      %p110 = por %p108, %p109
      %p111 = scmp.ne.s32.totalorder %s97, %s98
      %p112 = scmp.eq.s32.totalorder %s27, 1
      %p113 = por %p111, %p112
      %p115 = scmp.ne.s32.totalorder %s98, %s114
      %p116 = scmp.eq.s32.totalorder %s27, 0
      %p117 = por %p115, %p116
      %s118 = ssub.s32 %s28, %s40
      %s119 = ssub.s32 %s29, %s36
      %s120 = sor.u32 %s118, %s119
      %p121 = scmp.eq.s32.totalorder %s120, 0
      %s123 = sadd.s32 %s122, 1
      %s124 = scalar_select %p121, %s122, %s123
      %p127 = pneg %p121
      %p128 = scmp.eq.s32.totalorder %s21, 1
      %p129 = por %p127, %p128
      %p130 = scmp.ne.s32.totalorder %s122, %s125
      %p131 = scmp.eq.s32.totalorder %s21, 0
      %p132 = por %p130, %p131
      %p133 = scmp.ne.s32.totalorder %s122, %s125
      %p134 = scmp.eq.s32.totalorder %s26, 1
      %p135 = por %p133, %p134
      %p136 = scmp.ne.s32.totalorder %s125, %s126
      %p137 = scmp.eq.s32.totalorder %s26, 0
      %p138 = por %p136, %p137
      %p139 = scmp.ne.s32.totalorder %s125, %s126
      %p140 = scmp.eq.s32.totalorder %s27, 1
      %p141 = por %p139, %p140
      %p143 = scmp.ne.s32.totalorder %s126, %s142
      %p144 = scmp.eq.s32.totalorder %s27, 0
      %p145 = por %p143, %p144
      %s146 = ssub.s32 %s28, %s40
      %s147 = ssub.s32 %s29, %s36
      %s148 = sor.u32 %s146, %s147
      %p149 = scmp.eq.s32.totalorder %s148, 0
      %s151 = sadd.s32 %s150, 1
      %s152 = scalar_select %p149, %s150, %s151
      %p155 = pneg %p149
      %p156 = scmp.eq.s32.totalorder %s21, 1
      %p157 = por %p155, %p156
      %p158 = scmp.ne.s32.totalorder %s150, %s153
      %p159 = scmp.eq.s32.totalorder %s21, 0
      %p160 = por %p158, %p159
      %p161 = scmp.ne.s32.totalorder %s150, %s153
      %p162 = scmp.eq.s32.totalorder %s26, 1
      %p163 = por %p161, %p162
      %p164 = scmp.ne.s32.totalorder %s153, %s154
      %p165 = scmp.eq.s32.totalorder %s26, 0
      %p166 = por %p164, %p165
      %p167 = scmp.ne.s32.totalorder %s153, %s154
      %p168 = scmp.eq.s32.totalorder %s27, 1
      %p169 = por %p167, %p168
      %p171 = scmp.ne.s32.totalorder %s154, %s170
      %p172 = scmp.eq.s32.totalorder %s27, 0
      %p173 = por %p171, %p172
      %p174 = scmp.le.s32.totalorder 1, %s21
      %p175 = scmp.lt.s32.totalorder %s21, 3
      %p176 = pnand %p174, %p175
      %p177 = pneg %p176
      // Predicated region
      $region9: #{tpu_custom_call.1} parent=5 // pred_check
        _
      $region10: #{tpu_custom_call.1} parent=5 // pred_check_branch
        %179 = sbr.rel (%p176) target = $region12
      $region11: #{tpu_custom_call.1} parent=5 // pred_region
        %s180 = ssub.s32 %s21, 1
        // Predicated region
        $region13: #{tpu_custom_call.1} parent=11 // pred_check
          %p181 = pneg %p82
        $region14: #{tpu_custom_call.1} parent=11 // pred_check_branch
          %183 = sbr.rel (%p181) target = $region16
        $region15: #{tpu_custom_call.1} parent=11 // pred_region
          %s185 = ssub.s32 9216, 9216
          %186 = vsyncadd [#allocation6], %s185
          %s187 = sshll.u32 [#allocation5], 4
          %s188 = int_to_ptr.vmem [resolvable:$true] %s187
          %193 = dma.hbm_to_vmem [thread:$0]  %s1, 9216, %s188, [#allocation6], 192, 192, 12
        $region16: #{tpu_custom_call.1} parent=11 // pred_fallthru
          _
      $region12: #{tpu_custom_call.1} parent=5 // pred_fallthru
        _
      %p194 = scmp.lt.s32.totalorder %s21, 2
      // Predicated region
      $region17: #{tpu_custom_call.1} parent=5 // pred_check
        %p195 = pneg %p194
      $region18: #{tpu_custom_call.1} parent=5 // pred_check_branch
        %197 = sbr.rel (%p195) target = $region20
      $region19: #{tpu_custom_call.1} parent=5 // pred_region
        // Predicated region
        $region21: #{tpu_custom_call.1} parent=19 // pred_check
          %p198 = pneg %p55
        $region22: #{tpu_custom_call.1} parent=19 // pred_check_branch
          %200 = sbr.rel (%p198) target = $region24
        $region23: #{tpu_custom_call.1} parent=19 // pred_region
          %s201 = sand.u32 %s45, 1
          %s202 = scalar_lea.sflag [#allocation3], %s201
          %s203 = sand.u32 %s45, 1
          %s204 = smul.addr %s203, 192
          %s205 = scalar_lea.vmem [#allocation2], %s204
          %s206 = smul.u32 16, %s29
          %s208 = ssub.s32 3072, 3072
          %209 = vsyncadd %s202, %s208
          %s210 = smul.addr %s206, 3
          %s211 = smul.addr %s28, 48
          %s212 = sadd.s32 %s210, %s211
          %s213 = smul.addr %s212, 64
          %s214 = scalar_lea.hbm %s0, %s213
          %s215 = sshll.u32 %s205, 4
          %s216 = int_to_ptr.vmem [resolvable:$true] %s215
          %221 = dma.hbm_to_vmem [thread:$0]  %s214, 3072, %s216, %s202, 192, 192, 12
        $region24: #{tpu_custom_call.1} parent=19 // pred_fallthru
          _
      $region20: #{tpu_custom_call.1} parent=5 // pred_fallthru
        _
      %p222 = scmp.le.s32.totalorder 1, %s21
      %p223 = scmp.lt.s32.totalorder %s21, 3
      %p224 = pnand %p222, %p223
      %p225 = pneg %p224
      // Predicated region
      $region25: #{tpu_custom_call.1} parent=5 // pred_check
        _
      $region26: #{tpu_custom_call.1} parent=5 // pred_check_branch
        %227 = sbr.rel (%p224) target = $region28
      $region27: #{tpu_custom_call.1} parent=5 // pred_region
        %s228 = ssub.s32 %s21, 1
        %s229 = sand.u32 %s48, 1
        %s230 = scalar_lea.sflag [#allocation3], %s229
        %s231 = sand.u32 %s48, 1
        %s232 = smul.addr %s231, 192
        %s233 = scalar_lea.vmem [#allocation2], %s232
        // Predicated region
        $region29: #{tpu_custom_call.1} parent=27 // pred_check
          %p234 = pneg %p61
        $region30: #{tpu_custom_call.1} parent=27 // pred_check_branch
          %236 = sbr.rel (%p234) target = $region32
        $region31: #{tpu_custom_call.1} parent=27 // pred_region
          %237 = dma.done %s230, 3072
        $region32: #{tpu_custom_call.1} parent=27 // pred_fallthru
          _
        // Predicated region
        $region33: #{tpu_custom_call.1} parent=27 // pred_check
          %p238 = pneg %p82
        $region34: #{tpu_custom_call.1} parent=27 // pred_check_branch
          %240 = sbr.rel (%p238) target = $region36
        $region35: #{tpu_custom_call.1} parent=27 // pred_region
          %241 = dma.done [#allocation6], 9216
        $region36: #{tpu_custom_call.1} parent=27 // pred_fallthru
          _
        %s242 = sand.u32 %s48, 1
        %s243 = scalar_lea.sflag [#allocation3], %s242
        %s244 = sand.u32 %s48, 1
        %s245 = smul.addr %s244, 192
        %s246 = scalar_lea.vmem [#allocation2], %s245
        %p247 = pneg %p61
        %p248 = pneg %p58
        %p249 = pneg %p82
        %p250 = pneg %p79
        %p251 = pneg %p110
        %p252 = pneg %p107
        %s253 = sand.u32 %s97, 1
        %s254 = scalar_lea.sflag [#allocation4], %s253
        %s255 = sand.u32 %s97, 1
        %s256 = smul.addr %s255, 64
        %s257 = scalar_lea.vmem [#allocation7], %s256
        %p258 = pneg %p138
        %p259 = pneg %p135
        %s260 = sand.u32 %s26, 1
        %s261 = scalar_lea.sflag [#allocation9], %s260
        %s262 = sand.u32 %s125, 1
        %s263 = smul.addr %s262, 64
        %s264 = scalar_lea.vmem [#allocation8], %s263
        %p265 = pneg %p166
        %p266 = pneg %p163
        %s267 = sand.u32 %s26, 1
        %s268 = scalar_lea.sflag [#allocation9], %s267
        %s269 = sand.u32 %s153, 1
        %s270 = smul.addr %s269, 64
        %s271 = scalar_lea.vmem [#allocation10], %s270
        %s272 = smul.u32 16, %s31
        %s273 = smul.u32 16, %s31
        %s274 = smul.u32 16, %s31
        %s275 = smul.u32 16, %s31
        %v277 = vld [vmem:[%s233] sm:$0xff]
        %v278 = vld [vmem:[%s233 + $0x8] sm:$0xf]
        %v279 = vld [vmem:[%s233 + $0xc] sm:$0xff]
        %v280 = vld [vmem:[%s233 + $0x14] sm:$0xf]
        %v281 = vld [vmem:[%s233 + $0x18] sm:$0xff]
        %v282 = vld [vmem:[%s233 + $0x20] sm:$0xf]
        %v283 = vld [vmem:[%s233 + $0x24] sm:$0xff]
        %v284 = vld [vmem:[%s233 + $0x2c] sm:$0xf]
        %v285 = vld [vmem:[%s233 + $0x30] sm:$0xff]
        %v286 = vld [vmem:[%s233 + $0x38] sm:$0xf]
        %v287 = vld [vmem:[%s233 + $0x3c] sm:$0xff]
        %v288 = vld [vmem:[%s233 + $0x44] sm:$0xf]
        %v289 = vld [vmem:[%s233 + $0x48] sm:$0xff]
        %v290 = vld [vmem:[%s233 + $0x50] sm:$0xf]
        %v291 = vld [vmem:[%s233 + $0x54] sm:$0xff]
        %v292 = vld [vmem:[%s233 + $0x5c] sm:$0xf]
        %v293 = vld [vmem:[%s233 + $0x60] sm:$0xff]
        %v294 = vld [vmem:[%s233 + $0x68] sm:$0xf]
        %v295 = vld [vmem:[%s233 + $0x6c] sm:$0xff]
        %v296 = vld [vmem:[%s233 + $0x74] sm:$0xf]
        %v297 = vld [vmem:[%s233 + $0x78] sm:$0xff]
        %v298 = vld [vmem:[%s233 + $0x80] sm:$0xf]
        %v299 = vld [vmem:[%s233 + $0x84] sm:$0xff]
        %v300 = vld [vmem:[%s233 + $0x8c] sm:$0xf]
        %v301 = vld [vmem:[%s233 + $0x90] sm:$0xff]
        %v302 = vld [vmem:[%s233 + $0x98] sm:$0xf]
        %v303 = vld [vmem:[%s233 + $0x9c] sm:$0xff]
        %v304 = vld [vmem:[%s233 + $0xa4] sm:$0xf]
        %v305 = vld [vmem:[%s233 + $0xa8] sm:$0xff]
        %v306 = vld [vmem:[%s233 + $0xb0] sm:$0xf]
        %v307 = vld [vmem:[%s233 + $0xb4] sm:$0xff]
        %v308 = vld [vmem:[%s233 + $0xbc] sm:$0xf]
        %v309 = vld [vmem:[#allocation5] sm:$0xff]
        %v310 = vld [vmem:[#allocation5 + $0x8] sm:$0xf]
        %v311 = vld [vmem:[#allocation5 + $0xc] sm:$0xff]
        %v312 = vld [vmem:[#allocation5 + $0x14] sm:$0xf]
        %v313 = vld [vmem:[#allocation5 + $0x18] sm:$0xff]
        %v314 = vld [vmem:[#allocation5 + $0x20] sm:$0xf]
        %v315 = vld [vmem:[#allocation5 + $0x24] sm:$0xff]
        %v316 = vld [vmem:[#allocation5 + $0x2c] sm:$0xf]
        %v317 = vld [vmem:[#allocation5 + $0x30] sm:$0xff]
        %v318 = vld [vmem:[#allocation5 + $0x38] sm:$0xf]
        %v319 = vld [vmem:[#allocation5 + $0x3c] sm:$0xff]
        %v320 = vld [vmem:[#allocation5 + $0x44] sm:$0xf]
        %v321 = vld [vmem:[#allocation5 + $0x48] sm:$0xff]
        %v322 = vld [vmem:[#allocation5 + $0x50] sm:$0xf]
        %v323 = vld [vmem:[#allocation5 + $0x54] sm:$0xff]
        %v324 = vld [vmem:[#allocation5 + $0x5c] sm:$0xf]
        %v325 = vld [vmem:[#allocation5 + $0x60] sm:$0xff]
        %v326 = vld [vmem:[#allocation5 + $0x68] sm:$0xf]
        %v327 = vld [vmem:[#allocation5 + $0x6c] sm:$0xff]
        %v328 = vld [vmem:[#allocation5 + $0x74] sm:$0xf]
        %v329 = vld [vmem:[#allocation5 + $0x78] sm:$0xff]
        %v330 = vld [vmem:[#allocation5 + $0x80] sm:$0xf]
        %v331 = vld [vmem:[#allocation5 + $0x84] sm:$0xff]
        %v332 = vld [vmem:[#allocation5 + $0x8c] sm:$0xf]
        %v333 = vld [vmem:[#allocation5 + $0x90] sm:$0xff]
        %v334 = vld [vmem:[#allocation5 + $0x98] sm:$0xf]
        %v335 = vld [vmem:[#allocation5 + $0x9c] sm:$0xff]
        %v336 = vld [vmem:[#allocation5 + $0xa4] sm:$0xf]
        %v337 = vld [vmem:[#allocation5 + $0xa8] sm:$0xff]
        %v338 = vld [vmem:[#allocation5 + $0xb0] sm:$0xf]
        %v339 = vld [vmem:[#allocation5 + $0xb4] sm:$0xff]
        %v340 = vld [vmem:[#allocation5 + $0xbc] sm:$0xf]
        %v341 = vld [vmem:[#allocation5 + $0xc0] sm:$0xff]
        %v342 = vld [vmem:[#allocation5 + $0xc8] sm:$0xf]
        %v343 = vld [vmem:[#allocation5 + $0xcc] sm:$0xff]
        %v344 = vld [vmem:[#allocation5 + $0xd4] sm:$0xf]
        %v345 = vld [vmem:[#allocation5 + $0xd8] sm:$0xff]
        %v346 = vld [vmem:[#allocation5 + $0xe0] sm:$0xf]
        %v347 = vld [vmem:[#allocation5 + $0xe4] sm:$0xff]
        %v348 = vld [vmem:[#allocation5 + $0xec] sm:$0xf]
        %v349 = vld [vmem:[#allocation5 + $0xf0] sm:$0xff]
        %v350 = vld [vmem:[#allocation5 + $0xf8] sm:$0xf]
        %v351 = vld [vmem:[#allocation5 + $0xfc] sm:$0xff]
        %v352 = vld [vmem:[#allocation5 + $0x104] sm:$0xf]
        %v353 = vld [vmem:[#allocation5 + $0x108] sm:$0xff]
        %v354 = vld [vmem:[#allocation5 + $0x110] sm:$0xf]
        %v355 = vld [vmem:[#allocation5 + $0x114] sm:$0xff]
        %v356 = vld [vmem:[#allocation5 + $0x11c] sm:$0xf]
        %v357 = vld [vmem:[#allocation5 + $0x120] sm:$0xff]
        %v358 = vld [vmem:[#allocation5 + $0x128] sm:$0xf]
        %v359 = vld [vmem:[#allocation5 + $0x12c] sm:$0xff]
        %v360 = vld [vmem:[#allocation5 + $0x134] sm:$0xf]
        %v361 = vld [vmem:[#allocation5 + $0x138] sm:$0xff]
        %v362 = vld [vmem:[#allocation5 + $0x140] sm:$0xf]
        %v363 = vld [vmem:[#allocation5 + $0x144] sm:$0xff]
        %v364 = vld [vmem:[#allocation5 + $0x14c] sm:$0xf]
        %v365 = vld [vmem:[#allocation5 + $0x150] sm:$0xff]
        %v366 = vld [vmem:[#allocation5 + $0x158] sm:$0xf]
        %v367 = vld [vmem:[#allocation5 + $0x15c] sm:$0xff]
        %v368 = vld [vmem:[#allocation5 + $0x164] sm:$0xf]
        %v369 = vld [vmem:[#allocation5 + $0x168] sm:$0xff]
        %v370 = vld [vmem:[#allocation5 + $0x170] sm:$0xf]
        %v371 = vld [vmem:[#allocation5 + $0x174] sm:$0xff]
        %v372 = vld [vmem:[#allocation5 + $0x17c] sm:$0xf]
        %v373 = vld [vmem:[#allocation5 + $0x180] sm:$0xff]
        %v374 = vld [vmem:[#allocation5 + $0x188] sm:$0xf]
        %v375 = vld [vmem:[#allocation5 + $0x18c] sm:$0xff]
        %v376 = vld [vmem:[#allocation5 + $0x194] sm:$0xf]
        %v377 = vld [vmem:[#allocation5 + $0x198] sm:$0xff]
        %v378 = vld [vmem:[#allocation5 + $0x1a0] sm:$0xf]
        %v379 = vld [vmem:[#allocation5 + $0x1a4] sm:$0xff]
        %v380 = vld [vmem:[#allocation5 + $0x1ac] sm:$0xf]
        %v381 = vld [vmem:[#allocation5 + $0x1b0] sm:$0xff]
        %v382 = vld [vmem:[#allocation5 + $0x1b8] sm:$0xf]
        %v383 = vld [vmem:[#allocation5 + $0x1bc] sm:$0xff]
        %v384 = vld [vmem:[#allocation5 + $0x1c4] sm:$0xf]
        %v385 = vld [vmem:[#allocation5 + $0x1c8] sm:$0xff]
        %v386 = vld [vmem:[#allocation5 + $0x1d0] sm:$0xf]
        %v387 = vld [vmem:[#allocation5 + $0x1d4] sm:$0xff]
        %v388 = vld [vmem:[#allocation5 + $0x1dc] sm:$0xf]
        %v389 = vld [vmem:[#allocation5 + $0x1e0] sm:$0xff]
        %v390 = vld [vmem:[#allocation5 + $0x1e8] sm:$0xf]
        %v391 = vld [vmem:[#allocation5 + $0x1ec] sm:$0xff]
        %v392 = vld [vmem:[#allocation5 + $0x1f4] sm:$0xf]
        %v393 = vld [vmem:[#allocation5 + $0x1f8] sm:$0xff]
        %v394 = vld [vmem:[#allocation5 + $0x200] sm:$0xf]
        %v395 = vld [vmem:[#allocation5 + $0x204] sm:$0xff]
        %v396 = vld [vmem:[#allocation5 + $0x20c] sm:$0xf]
        %v397 = vld [vmem:[#allocation5 + $0x210] sm:$0xff]
        %v398 = vld [vmem:[#allocation5 + $0x218] sm:$0xf]
        %v399 = vld [vmem:[#allocation5 + $0x21c] sm:$0xff]
        %v400 = vld [vmem:[#allocation5 + $0x224] sm:$0xf]
        %v401 = vld [vmem:[#allocation5 + $0x228] sm:$0xff]
        %v402 = vld [vmem:[#allocation5 + $0x230] sm:$0xf]
        %v403 = vld [vmem:[#allocation5 + $0x234] sm:$0xff]
        %v404 = vld [vmem:[#allocation5 + $0x23c] sm:$0xf]
        %v437 = vunpack.c.l.b16 %v277
        %v438 = vunpack.c.h.b16 %v277
        %v439 = vunpack.c.l.b16 %v278
        %v440 = vunpack.c.l.b16 %v279
        %v441 = vunpack.c.h.b16 %v279
        %v442 = vunpack.c.l.b16 %v280
        %v443 = vunpack.c.l.b16 %v281
        %v444 = vunpack.c.h.b16 %v281
        %v445 = vunpack.c.l.b16 %v282
        %v446 = vunpack.c.l.b16 %v283
        %v447 = vunpack.c.h.b16 %v283
        %v448 = vunpack.c.l.b16 %v284
        %v449 = vunpack.c.l.b16 %v285
        %v450 = vunpack.c.h.b16 %v285
        %v451 = vunpack.c.l.b16 %v286
        %v452 = vunpack.c.l.b16 %v287
        %v453 = vunpack.c.h.b16 %v287
        %v454 = vunpack.c.l.b16 %v288
        %v455 = vunpack.c.l.b16 %v289
        %v456 = vunpack.c.h.b16 %v289
        %v457 = vunpack.c.l.b16 %v290
        %v458 = vunpack.c.l.b16 %v291
        %v459 = vunpack.c.h.b16 %v291
        %v460 = vunpack.c.l.b16 %v292
        %v461 = vunpack.c.l.b16 %v293
        %v462 = vunpack.c.h.b16 %v293
        %v463 = vunpack.c.l.b16 %v294
        %v464 = vunpack.c.l.b16 %v295
        %v465 = vunpack.c.h.b16 %v295
        %v466 = vunpack.c.l.b16 %v296
        %v467 = vunpack.c.l.b16 %v297
        %v468 = vunpack.c.h.b16 %v297
        %v469 = vunpack.c.l.b16 %v298
        %v470 = vunpack.c.l.b16 %v299
        %v471 = vunpack.c.h.b16 %v299
        %v472 = vunpack.c.l.b16 %v300
        %v473 = vunpack.c.l.b16 %v301
        %v474 = vunpack.c.h.b16 %v301
        %v475 = vunpack.c.l.b16 %v302
        %v476 = vunpack.c.l.b16 %v303
        %v477 = vunpack.c.h.b16 %v303
        %v478 = vunpack.c.l.b16 %v304
        %v479 = vunpack.c.l.b16 %v305
        %v480 = vunpack.c.h.b16 %v305
        %v481 = vunpack.c.l.b16 %v306
        %v482 = vunpack.c.l.b16 %v307
        %v483 = vunpack.c.h.b16 %v307
        %v484 = vunpack.c.l.b16 %v308
        %v485 = vpack.c.b16 %v440, %v437
        %v486 = vpack.c.b16 %v441, %v438
        %v487 = vpack.c.b16 %v442, %v439
        %v488 = vpack.c.b16 %v446, %v443
        %v489 = vpack.c.b16 %v447, %v444
        %v490 = vpack.c.b16 %v448, %v445
        %v491 = vpack.c.b16 %v452, %v449
        %v492 = vpack.c.b16 %v453, %v450
        %v493 = vpack.c.b16 %v454, %v451
        %v494 = vpack.c.b16 %v458, %v455
        %v495 = vpack.c.b16 %v459, %v456
        %v496 = vpack.c.b16 %v460, %v457
        %v497 = vpack.c.b16 %v464, %v461
        %v498 = vpack.c.b16 %v465, %v462
        %v499 = vpack.c.b16 %v466, %v463
        %v500 = vpack.c.b16 %v470, %v467
        %v501 = vpack.c.b16 %v471, %v468
        %v502 = vpack.c.b16 %v472, %v469
        %v503 = vpack.c.b16 %v476, %v473
        %v504 = vpack.c.b16 %v477, %v474
        %v505 = vpack.c.b16 %v478, %v475
        %v506 = vpack.c.b16 %v482, %v479
        %v507 = vpack.c.b16 %v483, %v480
        %v508 = vpack.c.b16 %v484, %v481
        %v629 = vunpack.c.l.b16 %v309
        %v630 = vunpack.c.h.b16 %v309
        %v631 = vunpack.c.l.b16 %v310
        %v632 = vunpack.c.l.b16 %v311
        %v633 = vunpack.c.h.b16 %v311
        %v634 = vunpack.c.l.b16 %v312
        %v635 = vunpack.c.l.b16 %v313
        %v636 = vunpack.c.h.b16 %v313
        %v637 = vunpack.c.l.b16 %v314
        %v638 = vunpack.c.l.b16 %v315
        %v639 = vunpack.c.h.b16 %v315
        %v640 = vunpack.c.l.b16 %v316
        %v641 = vunpack.c.l.b16 %v317
        %v642 = vunpack.c.h.b16 %v317
        %v643 = vunpack.c.l.b16 %v318
        %v644 = vunpack.c.l.b16 %v319
        %v645 = vunpack.c.h.b16 %v319
        %v646 = vunpack.c.l.b16 %v320
        %v647 = vunpack.c.l.b16 %v321
        %v648 = vunpack.c.h.b16 %v321
        %v649 = vunpack.c.l.b16 %v322
        %v650 = vunpack.c.l.b16 %v323
        %v651 = vunpack.c.h.b16 %v323
        %v652 = vunpack.c.l.b16 %v324
        %v653 = vunpack.c.l.b16 %v325
        %v654 = vunpack.c.h.b16 %v325
        %v655 = vunpack.c.l.b16 %v326
        %v656 = vunpack.c.l.b16 %v327
        %v657 = vunpack.c.h.b16 %v327
        %v658 = vunpack.c.l.b16 %v328
        %v659 = vunpack.c.l.b16 %v329
        %v660 = vunpack.c.h.b16 %v329
        %v661 = vunpack.c.l.b16 %v330
        %v662 = vunpack.c.l.b16 %v331
        %v663 = vunpack.c.h.b16 %v331
        %v664 = vunpack.c.l.b16 %v332
        %v665 = vunpack.c.l.b16 %v333
        %v666 = vunpack.c.h.b16 %v333
        %v667 = vunpack.c.l.b16 %v334
        %v668 = vunpack.c.l.b16 %v335
        %v669 = vunpack.c.h.b16 %v335
        %v670 = vunpack.c.l.b16 %v336
        %v671 = vunpack.c.l.b16 %v337
        %v672 = vunpack.c.h.b16 %v337
        %v673 = vunpack.c.l.b16 %v338
        %v674 = vunpack.c.l.b16 %v339
        %v675 = vunpack.c.h.b16 %v339
        %v676 = vunpack.c.l.b16 %v340
        %v677 = vunpack.c.l.b16 %v341
        %v678 = vunpack.c.h.b16 %v341
        %v679 = vunpack.c.l.b16 %v342
        %v680 = vunpack.c.l.b16 %v343
        %v681 = vunpack.c.h.b16 %v343
        %v682 = vunpack.c.l.b16 %v344
        %v683 = vunpack.c.l.b16 %v345
        %v684 = vunpack.c.h.b16 %v345
        %v685 = vunpack.c.l.b16 %v346
        %v686 = vunpack.c.l.b16 %v347
        %v687 = vunpack.c.h.b16 %v347
        %v688 = vunpack.c.l.b16 %v348
        %v689 = vunpack.c.l.b16 %v349
        %v690 = vunpack.c.h.b16 %v349
        %v691 = vunpack.c.l.b16 %v350
        %v692 = vunpack.c.l.b16 %v351
        %v693 = vunpack.c.h.b16 %v351
        %v694 = vunpack.c.l.b16 %v352
        %v695 = vunpack.c.l.b16 %v353
        %v696 = vunpack.c.h.b16 %v353
        %v697 = vunpack.c.l.b16 %v354
        %v698 = vunpack.c.l.b16 %v355
        %v699 = vunpack.c.h.b16 %v355
        %v700 = vunpack.c.l.b16 %v356
        %v701 = vunpack.c.l.b16 %v357
        %v702 = vunpack.c.h.b16 %v357
        %v703 = vunpack.c.l.b16 %v358
        %v704 = vunpack.c.l.b16 %v359
        %v705 = vunpack.c.h.b16 %v359
        %v706 = vunpack.c.l.b16 %v360
        %v707 = vunpack.c.l.b16 %v361
        %v708 = vunpack.c.h.b16 %v361
        %v709 = vunpack.c.l.b16 %v362
        %v710 = vunpack.c.l.b16 %v363
        %v711 = vunpack.c.h.b16 %v363
        %v712 = vunpack.c.l.b16 %v364
        %v713 = vunpack.c.l.b16 %v365
        %v714 = vunpack.c.h.b16 %v365
        %v715 = vunpack.c.l.b16 %v366
        %v716 = vunpack.c.l.b16 %v367
        %v717 = vunpack.c.h.b16 %v367
        %v718 = vunpack.c.l.b16 %v368
        %v719 = vunpack.c.l.b16 %v369
        %v720 = vunpack.c.h.b16 %v369
        %v721 = vunpack.c.l.b16 %v370
        %v722 = vunpack.c.l.b16 %v371
        %v723 = vunpack.c.h.b16 %v371
        %v724 = vunpack.c.l.b16 %v372
        %v725 = vunpack.c.l.b16 %v373
        %v726 = vunpack.c.h.b16 %v373
        %v727 = vunpack.c.l.b16 %v374
        %v728 = vunpack.c.l.b16 %v375
        %v729 = vunpack.c.h.b16 %v375
        %v730 = vunpack.c.l.b16 %v376
        %v731 = vunpack.c.l.b16 %v377
        %v732 = vunpack.c.h.b16 %v377
        %v733 = vunpack.c.l.b16 %v378
        %v734 = vunpack.c.l.b16 %v379
        %v735 = vunpack.c.h.b16 %v379
        %v736 = vunpack.c.l.b16 %v380
        %v737 = vunpack.c.l.b16 %v381
        %v738 = vunpack.c.h.b16 %v381
        %v739 = vunpack.c.l.b16 %v382
        %v740 = vunpack.c.l.b16 %v383
        %v741 = vunpack.c.h.b16 %v383
        %v742 = vunpack.c.l.b16 %v384
        %v743 = vunpack.c.l.b16 %v385
        %v744 = vunpack.c.h.b16 %v385
        %v745 = vunpack.c.l.b16 %v386
        %v746 = vunpack.c.l.b16 %v387
        %v747 = vunpack.c.h.b16 %v387
        %v748 = vunpack.c.l.b16 %v388
        %v749 = vunpack.c.l.b16 %v389
        %v750 = vunpack.c.h.b16 %v389
        %v751 = vunpack.c.l.b16 %v390
        %v752 = vunpack.c.l.b16 %v391
        %v753 = vunpack.c.h.b16 %v391
        %v754 = vunpack.c.l.b16 %v392
        %v755 = vunpack.c.l.b16 %v393
        %v756 = vunpack.c.h.b16 %v393
        %v757 = vunpack.c.l.b16 %v394
        %v758 = vunpack.c.l.b16 %v395
        %v759 = vunpack.c.h.b16 %v395
        %v760 = vunpack.c.l.b16 %v396
        %v761 = vunpack.c.l.b16 %v397
        %v762 = vunpack.c.h.b16 %v397
        %v763 = vunpack.c.l.b16 %v398
        %v764 = vunpack.c.l.b16 %v399
        %v765 = vunpack.c.h.b16 %v399
        %v766 = vunpack.c.l.b16 %v400
        %v767 = vunpack.c.l.b16 %v401
        %v768 = vunpack.c.h.b16 %v401
        %v769 = vunpack.c.l.b16 %v402
        %v770 = vunpack.c.l.b16 %v403
        %v771 = vunpack.c.h.b16 %v403
        %v772 = vunpack.c.l.b16 %v404
        %v773 = vpack.c.b16 %v632, %v629
        %v774 = vpack.c.b16 %v633, %v630
        %v775 = vpack.c.b16 %v634, %v631
        %v776 = vpack.c.b16 %v638, %v635
        %v777 = vpack.c.b16 %v639, %v636
        %v778 = vpack.c.b16 %v640, %v637
        %v779 = vpack.c.b16 %v644, %v641
        %v780 = vpack.c.b16 %v645, %v642
        %v781 = vpack.c.b16 %v646, %v643
        %v782 = vpack.c.b16 %v650, %v647
        %v783 = vpack.c.b16 %v651, %v648
        %v784 = vpack.c.b16 %v652, %v649
        %v785 = vpack.c.b16 %v656, %v653
        %v786 = vpack.c.b16 %v657, %v654
        %v787 = vpack.c.b16 %v658, %v655
        %v788 = vpack.c.b16 %v662, %v659
        %v789 = vpack.c.b16 %v663, %v660
        %v790 = vpack.c.b16 %v664, %v661
        %v791 = vpack.c.b16 %v668, %v665
        %v792 = vpack.c.b16 %v669, %v666
        %v793 = vpack.c.b16 %v670, %v667
        %v794 = vpack.c.b16 %v674, %v671
        %v795 = vpack.c.b16 %v675, %v672
        %v796 = vpack.c.b16 %v676, %v673
        %v797 = vpack.c.b16 %v680, %v677
        %v798 = vpack.c.b16 %v681, %v678
        %v799 = vpack.c.b16 %v682, %v679
        %v800 = vpack.c.b16 %v686, %v683
        %v801 = vpack.c.b16 %v687, %v684
        %v802 = vpack.c.b16 %v688, %v685
        %v803 = vpack.c.b16 %v692, %v689
        %v804 = vpack.c.b16 %v693, %v690
        %v805 = vpack.c.b16 %v694, %v691
        %v806 = vpack.c.b16 %v698, %v695
        %v807 = vpack.c.b16 %v699, %v696
        %v808 = vpack.c.b16 %v700, %v697
        %v809 = vpack.c.b16 %v704, %v701
        %v810 = vpack.c.b16 %v705, %v702
        %v811 = vpack.c.b16 %v706, %v703
        %v812 = vpack.c.b16 %v710, %v707
        %v813 = vpack.c.b16 %v711, %v708
        %v814 = vpack.c.b16 %v712, %v709
        %v815 = vpack.c.b16 %v716, %v713
        %v816 = vpack.c.b16 %v717, %v714
        %v817 = vpack.c.b16 %v718, %v715
        %v818 = vpack.c.b16 %v722, %v719
        %v819 = vpack.c.b16 %v723, %v720
        %v820 = vpack.c.b16 %v724, %v721
        %v821 = vpack.c.b16 %v728, %v725
        %v822 = vpack.c.b16 %v729, %v726
        %v823 = vpack.c.b16 %v730, %v727
        %v824 = vpack.c.b16 %v734, %v731
        %v825 = vpack.c.b16 %v735, %v732
        %v826 = vpack.c.b16 %v736, %v733
        %v827 = vpack.c.b16 %v740, %v737
        %v828 = vpack.c.b16 %v741, %v738
        %v829 = vpack.c.b16 %v742, %v739
        %v830 = vpack.c.b16 %v746, %v743
        %v831 = vpack.c.b16 %v747, %v744
        %v832 = vpack.c.b16 %v748, %v745
        %v833 = vpack.c.b16 %v752, %v749
        %v834 = vpack.c.b16 %v753, %v750
        %v835 = vpack.c.b16 %v754, %v751
        %v836 = vpack.c.b16 %v758, %v755
        %v837 = vpack.c.b16 %v759, %v756
        %v838 = vpack.c.b16 %v760, %v757
        %v839 = vpack.c.b16 %v764, %v761
        %v840 = vpack.c.b16 %v765, %v762
        %v841 = vpack.c.b16 %v766, %v763
        %v842 = vpack.c.b16 %v770, %v767
        %v843 = vpack.c.b16 %v771, %v768
        %v844 = vpack.c.b16 %v772, %v769
        %917 = vmatprep.subr.bf16.mxu0 %v795
        %918 = vmatpush1.bf16.msra.mxu0 %v794
        %919 = vmatprep.subr.bf16.mxu0 %v792
        %920 = vmatpush1.bf16.msra.mxu0 %v791
        %921 = vmatprep.subr.bf16.mxu0 %v789
        %922 = vmatpush1.bf16.msra.mxu0 %v788
        %923 = vmatprep.subr.bf16.mxu0 %v786
        %924 = vmatpush1.bf16.msra.mxu0 %v785
        %925 = vmatprep.subr.bf16.mxu0 %v783
        %926 = vmatpush1.bf16.msra.mxu0 %v782
        %927 = vmatprep.subr.bf16.mxu0 %v780
        %928 = vmatpush1.bf16.msra.mxu0 %v779
        %929 = vmatprep.subr.bf16.mxu0 %v777
        %930 = vmatpush1.bf16.msra.mxu0 %v776
        %931 = vmatprep.subr.bf16.mxu0 %v774
        %932 = vmatpush1.bf16.msra.mxu0 %v773
        %933 = vmatprep.subr.bf16.mxu0 %v819
        %934 = vmatpush2.bf16.msra.mxu0 %v818
        %935 = vmatprep.subr.bf16.mxu0 %v816
        %936 = vmatpush2.bf16.msra.mxu0 %v815
        %937 = vmatprep.subr.bf16.mxu0 %v813
        %938 = vmatpush2.bf16.msra.mxu0 %v812
        %939 = vmatprep.subr.bf16.mxu0 %v810
        %940 = vmatpush2.bf16.msra.mxu0 %v809
        %941 = vmatprep.subr.bf16.mxu0 %v807
        %942 = vmatpush2.bf16.msra.mxu0 %v806
        %943 = vmatprep.subr.bf16.mxu0 %v804
        %944 = vmatpush2.bf16.msra.mxu0 %v803
        %945 = vmatprep.subr.bf16.mxu0 %v801
        %946 = vmatpush2.bf16.msra.mxu0 %v800
        %947 = vmatprep.subr.bf16.mxu0 %v798
        %948 = vmatpush2.bf16.msra.mxu0 %v797
        %949 = vmatprep.mubr.bf16.mxu0 %v486
        %950 = vmatmul.mubr.bf16.gmra.mxu0 %v485
        %v951 = vpop.f32.mrf.mxu0
        %v952 = vadd.f32 0.0, %v951
        %v953 = vpop.f32.mrf.mxu0
        %v954 = vadd.f32 0.0, %v953
        %v955 = vpop.f32.mrf.mxu0
        %v956 = vadd.f32 0.0, %v955
        %v957 = vpop.f32.mrf.mxu0
        %v958 = vadd.f32 0.0, %v957
        %959 = vmatprep.mubr.bf16.mxu0 %v489
        %960 = vmatmul.mubr.bf16.gmra.mxu0 %v488
        %v961 = vpop.f32.mrf.mxu0
        %v962 = vadd.f32 0.0, %v961
        %v963 = vpop.f32.mrf.mxu0
        %v964 = vadd.f32 0.0, %v963
        %v965 = vpop.f32.mrf.mxu0
        %v966 = vadd.f32 0.0, %v965
        %v967 = vpop.f32.mrf.mxu0
        %v968 = vadd.f32 0.0, %v967
        %969 = vmatprep.mubr.bf16.mxu0 %v492
        %970 = vmatmul.mubr.bf16.gmra.mxu0 %v491
        %v971 = vpop.f32.mrf.mxu0
        %v972 = vadd.f32 0.0, %v971
        %v973 = vpop.f32.mrf.mxu0
        %v974 = vadd.f32 0.0, %v973
        %v975 = vpop.f32.mrf.mxu0
        %v976 = vadd.f32 0.0, %v975
        %v977 = vpop.f32.mrf.mxu0
        %v978 = vadd.f32 0.0, %v977
        %979 = vmatprep.mubr.bf16.mxu0 %v495
        %980 = vmatmul.mubr.bf16.gmra.mxu0 %v494
        %v981 = vpop.f32.mrf.mxu0
        %v982 = vadd.f32 0.0, %v981
        %v983 = vpop.f32.mrf.mxu0
        %v984 = vadd.f32 0.0, %v983
        %v985 = vpop.f32.mrf.mxu0
        %v986 = vadd.f32 0.0, %v985
        %v987 = vpop.f32.mrf.mxu0
        %v988 = vadd.f32 0.0, %v987
        %989 = vmatprep.mubr.bf16.mxu0 %v498
        %990 = vmatmul.mubr.bf16.gmra.mxu0 %v497
        %v991 = vpop.f32.mrf.mxu0
        %v992 = vadd.f32 0.0, %v991
        %v993 = vpop.f32.mrf.mxu0
        %v994 = vadd.f32 0.0, %v993
        %v995 = vpop.f32.mrf.mxu0
        %v996 = vadd.f32 0.0, %v995
        %v997 = vpop.f32.mrf.mxu0
        %v998 = vadd.f32 0.0, %v997
        %999 = vmatprep.mubr.bf16.mxu0 %v501
        %1000 = vmatmul.mubr.bf16.gmra.mxu0 %v500
        %v1001 = vpop.f32.mrf.mxu0
        %v1002 = vadd.f32 0.0, %v1001
        %v1003 = vpop.f32.mrf.mxu0
        %v1004 = vadd.f32 0.0, %v1003
        %v1005 = vpop.f32.mrf.mxu0
        %v1006 = vadd.f32 0.0, %v1005
        %v1007 = vpop.f32.mrf.mxu0
        %v1008 = vadd.f32 0.0, %v1007
        %1009 = vmatprep.mubr.bf16.mxu0 %v504
        %1010 = vmatmul.mubr.bf16.gmra.mxu0 %v503
        %v1011 = vpop.f32.mrf.mxu0
        %v1012 = vadd.f32 0.0, %v1011
        %v1013 = vpop.f32.mrf.mxu0
        %v1014 = vadd.f32 0.0, %v1013
        %v1015 = vpop.f32.mrf.mxu0
        %v1016 = vadd.f32 0.0, %v1015
        %v1017 = vpop.f32.mrf.mxu0
        %v1018 = vadd.f32 0.0, %v1017
        %1019 = vmatprep.mubr.bf16.mxu0 %v507
        %1020 = vmatmul.mubr.bf16.gmra.mxu0 %v506
        %v1021 = vpop.f32.mrf.mxu0
        %v1022 = vadd.f32 0.0, %v1021
        %v1023 = vpop.f32.mrf.mxu0
        %v1024 = vadd.f32 0.0, %v1023
        %v1025 = vpop.f32.mrf.mxu0
        %v1026 = vadd.f32 0.0, %v1025
        %v1027 = vpop.f32.mrf.mxu0
        %v1028 = vadd.f32 0.0, %v1027
        %1029 = vdwg.mxu0
        %1030 = vmatprep.subr.bf16.mxu0 %v843
        %1031 = vmatpush1.bf16.msra.mxu0 %v842
        %1032 = vmatprep.subr.bf16.mxu0 %v840
        %1033 = vmatpush1.bf16.msra.mxu0 %v839
        %1034 = vmatprep.subr.bf16.mxu0 %v837
        %1035 = vmatpush1.bf16.msra.mxu0 %v836
        %1036 = vmatprep.subr.bf16.mxu0 %v834
        %1037 = vmatpush1.bf16.msra.mxu0 %v833
        %1038 = vmatprep.subr.bf16.mxu0 %v831
        %1039 = vmatpush1.bf16.msra.mxu0 %v830
        %1040 = vmatprep.subr.bf16.mxu0 %v828
        %1041 = vmatpush1.bf16.msra.mxu0 %v827
        %1042 = vmatprep.subr.bf16.mxu0 %v825
        %1043 = vmatpush1.bf16.msra.mxu0 %v824
        %1044 = vmatprep.subr.bf16.mxu0 %v822
        %1045 = vmatpush1.bf16.msra.mxu0 %v821
        %1046 = vmatprep.subr.bf16.mxu0 0
        %1047 = vmatpush2.bf16.msra.mxu0 0
        %1048 = vmatprep.subr.bf16.mxu0 0
        %1049 = vmatpush2.bf16.msra.mxu0 0
        %1050 = vmatprep.subr.bf16.mxu0 0
        %1051 = vmatpush2.bf16.msra.mxu0 0
        %1052 = vmatprep.subr.bf16.mxu0 0
        %1053 = vmatpush2.bf16.msra.mxu0 0
        %1054 = vmatprep.subr.bf16.mxu0 0
        %1055 = vmatpush2.bf16.msra.mxu0 0
        %1056 = vmatprep.subr.bf16.mxu0 0
        %1057 = vmatpush2.bf16.msra.mxu0 0
        %1058 = vmatprep.subr.bf16.mxu0 0
        %1059 = vmatpush2.bf16.msra.mxu0 0
        %1060 = vmatprep.subr.bf16.mxu0 0
        %1061 = vmatpush2.bf16.msra.mxu0 0
        %1062 = vmatprep.mubr.bf16.mxu0 0
        %1063 = vmatmul.mubr.bf16.gmra.mxu0 %v487
        %v1064 = vpop.f32.mrf.mxu0
        %v1065 = vadd.f32 %v952, %v1064
        %v1066 = vpop.f32.mrf.mxu0
        %v1067 = vadd.f32 %v954, %v1066
        %v1068 = vpop.f32.mrf.mxu0
        %v1069 = vadd.f32 %v956, %v1068
        %v1070 = vpop.f32.mrf.mxu0
        %v1071 = vadd.f32 %v958, %v1070
        %1072 = vmatprep.mubr.bf16.mxu0 0
        %1073 = vmatmul.mubr.bf16.gmra.mxu0 %v490
        %v1074 = vpop.f32.mrf.mxu0
        %v1075 = vadd.f32 %v962, %v1074
        %v1076 = vpop.f32.mrf.mxu0
        %v1077 = vadd.f32 %v964, %v1076
        %v1078 = vpop.f32.mrf.mxu0
        %v1079 = vadd.f32 %v966, %v1078
        %v1080 = vpop.f32.mrf.mxu0
        %v1081 = vadd.f32 %v968, %v1080
        %1082 = vmatprep.mubr.bf16.mxu0 0
        %1083 = vmatmul.mubr.bf16.gmra.mxu0 %v493
        %v1084 = vpop.f32.mrf.mxu0
        %v1085 = vadd.f32 %v972, %v1084
        %v1086 = vpop.f32.mrf.mxu0
        %v1087 = vadd.f32 %v974, %v1086
        %v1088 = vpop.f32.mrf.mxu0
        %v1089 = vadd.f32 %v976, %v1088
        %v1090 = vpop.f32.mrf.mxu0
        %v1091 = vadd.f32 %v978, %v1090
        %1092 = vmatprep.mubr.bf16.mxu0 0
        %1093 = vmatmul.mubr.bf16.gmra.mxu0 %v496
        %v1094 = vpop.f32.mrf.mxu0
        %v1095 = vadd.f32 %v982, %v1094
        %v1096 = vpop.f32.mrf.mxu0
        %v1097 = vadd.f32 %v984, %v1096
        %v1098 = vpop.f32.mrf.mxu0
        %v1099 = vadd.f32 %v986, %v1098
        %v1100 = vpop.f32.mrf.mxu0
        %v1101 = vadd.f32 %v988, %v1100
        %1102 = vmatprep.mubr.bf16.mxu0 0
        %1103 = vmatmul.mubr.bf16.gmra.mxu0 %v499
        %v1104 = vpop.f32.mrf.mxu0
        %v1105 = vadd.f32 %v992, %v1104
        %v1106 = vpop.f32.mrf.mxu0
        %v1107 = vadd.f32 %v994, %v1106
        %v1108 = vpop.f32.mrf.mxu0
        %v1109 = vadd.f32 %v996, %v1108
        %v1110 = vpop.f32.mrf.mxu0
        %v1111 = vadd.f32 %v998, %v1110
        %1112 = vmatprep.mubr.bf16.mxu0 0
        %1113 = vmatmul.mubr.bf16.gmra.mxu0 %v502
        %v1114 = vpop.f32.mrf.mxu0
        %v1115 = vadd.f32 %v1002, %v1114
        %v1116 = vpop.f32.mrf.mxu0
        %v1117 = vadd.f32 %v1004, %v1116
        %v1118 = vpop.f32.mrf.mxu0
        %v1119 = vadd.f32 %v1006, %v1118
        %v1120 = vpop.f32.mrf.mxu0
        %v1121 = vadd.f32 %v1008, %v1120
        %1122 = vmatprep.mubr.bf16.mxu0 0
        %1123 = vmatmul.mubr.bf16.gmra.mxu0 %v505
        %v1124 = vpop.f32.mrf.mxu0
        %v1125 = vadd.f32 %v1012, %v1124
        %v1126 = vpop.f32.mrf.mxu0
        %v1127 = vadd.f32 %v1014, %v1126
        %v1128 = vpop.f32.mrf.mxu0
        %v1129 = vadd.f32 %v1016, %v1128
        %v1130 = vpop.f32.mrf.mxu0
        %v1131 = vadd.f32 %v1018, %v1130
        %1132 = vmatprep.mubr.bf16.mxu0 0
        %1133 = vmatmul.mubr.bf16.gmra.mxu0 %v508
        %v1134 = vpop.f32.mrf.mxu0
        %v1135 = vadd.f32 %v1022, %v1134
        %v1136 = vpop.f32.mrf.mxu0
        %v1137 = vadd.f32 %v1024, %v1136
        %v1138 = vpop.f32.mrf.mxu0
        %v1139 = vadd.f32 %v1026, %v1138
        %v1140 = vpop.f32.mrf.mxu0
        %v1141 = vadd.f32 %v1028, %v1140
        %1142 = vdwg.mxu0
        %1143 = vmatprep.subr.bf16.mxu0 0
        %1144 = vmatpush1.bf16.msra.mxu0 %v796
        %1145 = vmatprep.subr.bf16.mxu0 0
        %1146 = vmatpush1.bf16.msra.mxu0 %v793
        %1147 = vmatprep.subr.bf16.mxu0 0
        %1148 = vmatpush1.bf16.msra.mxu0 %v790
        %1149 = vmatprep.subr.bf16.mxu0 0
        %1150 = vmatpush1.bf16.msra.mxu0 %v787
        %1151 = vmatprep.subr.bf16.mxu0 0
        %1152 = vmatpush1.bf16.msra.mxu0 %v784
        %1153 = vmatprep.subr.bf16.mxu0 0
        %1154 = vmatpush1.bf16.msra.mxu0 %v781
        %1155 = vmatprep.subr.bf16.mxu0 0
        %1156 = vmatpush1.bf16.msra.mxu0 %v778
        %1157 = vmatprep.subr.bf16.mxu0 0
        %1158 = vmatpush1.bf16.msra.mxu0 %v775
        %1159 = vmatprep.subr.bf16.mxu0 0
        %1160 = vmatpush2.bf16.msra.mxu0 %v820
        %1161 = vmatprep.subr.bf16.mxu0 0
        %1162 = vmatpush2.bf16.msra.mxu0 %v817
        %1163 = vmatprep.subr.bf16.mxu0 0
        %1164 = vmatpush2.bf16.msra.mxu0 %v814
        %1165 = vmatprep.subr.bf16.mxu0 0
        %1166 = vmatpush2.bf16.msra.mxu0 %v811
        %1167 = vmatprep.subr.bf16.mxu0 0
        %1168 = vmatpush2.bf16.msra.mxu0 %v808
        %1169 = vmatprep.subr.bf16.mxu0 0
        %1170 = vmatpush2.bf16.msra.mxu0 %v805
        %1171 = vmatprep.subr.bf16.mxu0 0
        %1172 = vmatpush2.bf16.msra.mxu0 %v802
        %1173 = vmatprep.subr.bf16.mxu0 0
        %1174 = vmatpush2.bf16.msra.mxu0 %v799
        %1175 = vmatprep.mubr.bf16.mxu0 %v486
        %1176 = vmatmul.mubr.bf16.gmra.mxu0 %v485
        %v1177 = vpop.f32.mrf.mxu0
        %v1178 = vadd.f32 0.0, %v1177
        %v1179 = vpop.f32.mrf.mxu0
        %v1180 = vpop.f32.mrf.mxu0
        %v1181 = vadd.f32 0.0, %v1180
        %v1182 = vpop.f32.mrf.mxu0
        %1183 = vmatprep.mubr.bf16.mxu0 %v489
        %1184 = vmatmul.mubr.bf16.gmra.mxu0 %v488
        %v1185 = vpop.f32.mrf.mxu0
        %v1186 = vadd.f32 0.0, %v1185
        %v1187 = vpop.f32.mrf.mxu0
        %v1188 = vpop.f32.mrf.mxu0
        %v1189 = vadd.f32 0.0, %v1188
        %v1190 = vpop.f32.mrf.mxu0
        %1191 = vmatprep.mubr.bf16.mxu0 %v492
        %1192 = vmatmul.mubr.bf16.gmra.mxu0 %v491
        %v1193 = vpop.f32.mrf.mxu0
        %v1194 = vadd.f32 0.0, %v1193
        %v1195 = vpop.f32.mrf.mxu0
        %v1196 = vpop.f32.mrf.mxu0
        %v1197 = vadd.f32 0.0, %v1196
        %v1198 = vpop.f32.mrf.mxu0
        %1199 = vmatprep.mubr.bf16.mxu0 %v495
        %1200 = vmatmul.mubr.bf16.gmra.mxu0 %v494
        %v1201 = vpop.f32.mrf.mxu0
        %v1202 = vadd.f32 0.0, %v1201
        %v1203 = vpop.f32.mrf.mxu0
        %v1204 = vpop.f32.mrf.mxu0
        %v1205 = vadd.f32 0.0, %v1204
        %v1206 = vpop.f32.mrf.mxu0
        %1207 = vmatprep.mubr.bf16.mxu0 %v498
        %1208 = vmatmul.mubr.bf16.gmra.mxu0 %v497
        %v1209 = vpop.f32.mrf.mxu0
        %v1210 = vadd.f32 0.0, %v1209
        %v1211 = vpop.f32.mrf.mxu0
        %v1212 = vpop.f32.mrf.mxu0
        %v1213 = vadd.f32 0.0, %v1212
        %v1214 = vpop.f32.mrf.mxu0
        %1215 = vmatprep.mubr.bf16.mxu0 %v501
        %1216 = vmatmul.mubr.bf16.gmra.mxu0 %v500
        %v1217 = vpop.f32.mrf.mxu0
        %v1218 = vadd.f32 0.0, %v1217
        %v1219 = vpop.f32.mrf.mxu0
        %v1220 = vpop.f32.mrf.mxu0
        %v1221 = vadd.f32 0.0, %v1220
        %v1222 = vpop.f32.mrf.mxu0
        %1223 = vmatprep.mubr.bf16.mxu0 %v504
        %1224 = vmatmul.mubr.bf16.gmra.mxu0 %v503
        %v1225 = vpop.f32.mrf.mxu0
        %v1226 = vadd.f32 0.0, %v1225
        %v1227 = vpop.f32.mrf.mxu0
        %v1228 = vpop.f32.mrf.mxu0
        %v1229 = vadd.f32 0.0, %v1228
        %v1230 = vpop.f32.mrf.mxu0
        %1231 = vmatprep.mubr.bf16.mxu0 %v507
        %1232 = vmatmul.mubr.bf16.gmra.mxu0 %v506
        %v1233 = vpop.f32.mrf.mxu0
        %v1234 = vadd.f32 0.0, %v1233
        %v1235 = vpop.f32.mrf.mxu0
        %v1236 = vpop.f32.mrf.mxu0
        %v1237 = vadd.f32 0.0, %v1236
        %v1238 = vpop.f32.mrf.mxu0
        %1239 = vdwg.mxu0
        %1240 = vmatprep.subr.bf16.mxu0 0
        %1241 = vmatpush1.bf16.msra.mxu0 %v844
        %1242 = vmatprep.subr.bf16.mxu0 0
        %1243 = vmatpush1.bf16.msra.mxu0 %v841
        %1244 = vmatprep.subr.bf16.mxu0 0
        %1245 = vmatpush1.bf16.msra.mxu0 %v838
        %1246 = vmatprep.subr.bf16.mxu0 0
        %1247 = vmatpush1.bf16.msra.mxu0 %v835
        %1248 = vmatprep.subr.bf16.mxu0 0
        %1249 = vmatpush1.bf16.msra.mxu0 %v832
        %1250 = vmatprep.subr.bf16.mxu0 0
        %1251 = vmatpush1.bf16.msra.mxu0 %v829
        %1252 = vmatprep.subr.bf16.mxu0 0
        %1253 = vmatpush1.bf16.msra.mxu0 %v826
        %1254 = vmatprep.subr.bf16.mxu0 0
        %1255 = vmatpush1.bf16.msra.mxu0 %v823
        %1256 = vmatprep.subr.bf16.mxu0 0
        %1257 = vmatpush2.bf16.msra.mxu0 0
        %1258 = vmatprep.subr.bf16.mxu0 0
        %1259 = vmatpush2.bf16.msra.mxu0 0
        %1260 = vmatprep.subr.bf16.mxu0 0
        %1261 = vmatpush2.bf16.msra.mxu0 0
        %1262 = vmatprep.subr.bf16.mxu0 0
        %1263 = vmatpush2.bf16.msra.mxu0 0
        %1264 = vmatprep.subr.bf16.mxu0 0
        %1265 = vmatpush2.bf16.msra.mxu0 0
        %1266 = vmatprep.subr.bf16.mxu0 0
        %1267 = vmatpush2.bf16.msra.mxu0 0
        %1268 = vmatprep.subr.bf16.mxu0 0
        %1269 = vmatpush2.bf16.msra.mxu0 0
        %1270 = vmatprep.subr.bf16.mxu0 0
        %1271 = vmatpush2.bf16.msra.mxu0 0
        %1272 = vmatprep.mubr.bf16.mxu0 0
        %1273 = vmatmul.mubr.bf16.gmra.mxu0 %v487
        %v1274 = vpop.f32.mrf.mxu0
        %v1275 = vadd.f32 %v1178, %v1274
        %v1276 = vpop.f32.mrf.mxu0
        %v1277 = vpop.f32.mrf.mxu0
        %v1278 = vadd.f32 %v1181, %v1277
        %v1279 = vpop.f32.mrf.mxu0
        %1280 = vmatprep.mubr.bf16.mxu0 0
        %1281 = vmatmul.mubr.bf16.gmra.mxu0 %v490
        %v1282 = vpop.f32.mrf.mxu0
        %v1283 = vadd.f32 %v1186, %v1282
        %v1284 = vpop.f32.mrf.mxu0
        %v1285 = vpop.f32.mrf.mxu0
        %v1286 = vadd.f32 %v1189, %v1285
        %v1287 = vpop.f32.mrf.mxu0
        %1288 = vmatprep.mubr.bf16.mxu0 0
        %1289 = vmatmul.mubr.bf16.gmra.mxu0 %v493
        %v1290 = vpop.f32.mrf.mxu0
        %v1291 = vadd.f32 %v1194, %v1290
        %v1292 = vpop.f32.mrf.mxu0
        %v1293 = vpop.f32.mrf.mxu0
        %v1294 = vadd.f32 %v1197, %v1293
        %v1295 = vpop.f32.mrf.mxu0
        %1296 = vmatprep.mubr.bf16.mxu0 0
        %1297 = vmatmul.mubr.bf16.gmra.mxu0 %v496
        %v1298 = vpop.f32.mrf.mxu0
        %v1299 = vadd.f32 %v1202, %v1298
        %v1300 = vpop.f32.mrf.mxu0
        %v1301 = vpop.f32.mrf.mxu0
        %v1302 = vadd.f32 %v1205, %v1301
        %v1303 = vpop.f32.mrf.mxu0
        %1304 = vmatprep.mubr.bf16.mxu0 0
        %1305 = vmatmul.mubr.bf16.gmra.mxu0 %v499
        %v1306 = vpop.f32.mrf.mxu0
        %v1307 = vadd.f32 %v1210, %v1306
        %v1308 = vpop.f32.mrf.mxu0
        %v1309 = vpop.f32.mrf.mxu0
        %v1310 = vadd.f32 %v1213, %v1309
        %v1311 = vpop.f32.mrf.mxu0
        %1312 = vmatprep.mubr.bf16.mxu0 0
        %1313 = vmatmul.mubr.bf16.gmra.mxu0 %v502
        %v1314 = vpop.f32.mrf.mxu0
        %v1315 = vadd.f32 %v1218, %v1314
        %v1316 = vpop.f32.mrf.mxu0
        %v1317 = vpop.f32.mrf.mxu0
        %v1318 = vadd.f32 %v1221, %v1317
        %v1319 = vpop.f32.mrf.mxu0
        %1320 = vmatprep.mubr.bf16.mxu0 0
        %1321 = vmatmul.mubr.bf16.gmra.mxu0 %v505
        %v1322 = vpop.f32.mrf.mxu0
        %v1323 = vadd.f32 %v1226, %v1322
        %v1324 = vpop.f32.mrf.mxu0
        %v1325 = vpop.f32.mrf.mxu0
        %v1326 = vadd.f32 %v1229, %v1325
        %v1327 = vpop.f32.mrf.mxu0
        %1328 = vmatprep.mubr.bf16.mxu0 0
        %1329 = vmatmul.mubr.bf16.gmra.mxu0 %v508
        %v1330 = vpop.f32.mrf.mxu0
        %v1331 = vadd.f32 %v1234, %v1330
        %v1332 = vpop.f32.mrf.mxu0
        %v1333 = vpop.f32.mrf.mxu0
        %v1334 = vadd.f32 %v1237, %v1333
        %v1335 = vpop.f32.mrf.mxu0
        %1336 = vdwg.mxu0
        %v1337 = vpack.c.bf16 %v1069, %v1065
        %v1338 = vpack.c.bf16 %v1079, %v1075
        %v1339 = vpack.c.bf16 %v1089, %v1085
        %v1340 = vpack.c.bf16 %v1099, %v1095
        %v1341 = vpack.c.bf16 %v1109, %v1105
        %v1342 = vpack.c.bf16 %v1119, %v1115
        %v1343 = vpack.c.bf16 %v1129, %v1125
        %v1344 = vpack.c.bf16 %v1139, %v1135
        %v1353 = vunpack.c.l.b16 %v1337
        %v1354 = vunpack.c.h.b16 %v1337
        %v1355 = vunpack.c.l.b16 %v1338
        %v1356 = vunpack.c.h.b16 %v1338
        %v1357 = vunpack.c.l.b16 %v1339
        %v1358 = vunpack.c.h.b16 %v1339
        %v1359 = vunpack.c.l.b16 %v1340
        %v1360 = vunpack.c.h.b16 %v1340
        %v1361 = vunpack.c.l.b16 %v1341
        %v1362 = vunpack.c.h.b16 %v1341
        %v1363 = vunpack.c.l.b16 %v1342
        %v1364 = vunpack.c.h.b16 %v1342
        %v1365 = vunpack.c.l.b16 %v1343
        %v1366 = vunpack.c.h.b16 %v1343
        %v1367 = vunpack.c.l.b16 %v1344
        %v1368 = vunpack.c.h.b16 %v1344
        %v1369 = vpack.c.b16 %v1353, %v1353
        %v1370 = vpack.c.b16 %v1354, %v1354
        %v1371 = vpack.c.b16 %v1355, %v1355
        %v1372 = vpack.c.b16 %v1356, %v1356
        %v1373 = vpack.c.b16 %v1357, %v1357
        %v1374 = vpack.c.b16 %v1358, %v1358
        %v1375 = vpack.c.b16 %v1359, %v1359
        %v1376 = vpack.c.b16 %v1360, %v1360
        %v1377 = vpack.c.b16 %v1361, %v1361
        %v1378 = vpack.c.b16 %v1362, %v1362
        %v1379 = vpack.c.b16 %v1363, %v1363
        %v1380 = vpack.c.b16 %v1364, %v1364
        %v1381 = vpack.c.b16 %v1365, %v1365
        %v1382 = vpack.c.b16 %v1366, %v1366
        %v1383 = vpack.c.b16 %v1367, %v1367
        %v1384 = vpack.c.b16 %v1368, %v1368
        %1401 = vst [vmem:[%s257] sm:$0xf] %v1369
        %1402 = vst [vmem:[%s257 + $0x4] sm:$0xf] %v1370
        %1403 = vst [vmem:[%s257 + $0x8] sm:$0xf] %v1371
        %1404 = vst [vmem:[%s257 + $0xc] sm:$0xf] %v1372
        %1405 = vst [vmem:[%s257 + $0x10] sm:$0xf] %v1373
        %1406 = vst [vmem:[%s257 + $0x14] sm:$0xf] %v1374
        %1407 = vst [vmem:[%s257 + $0x18] sm:$0xf] %v1375
        %1408 = vst [vmem:[%s257 + $0x1c] sm:$0xf] %v1376
        %1409 = vst [vmem:[%s257 + $0x20] sm:$0xf] %v1377
        %1410 = vst [vmem:[%s257 + $0x24] sm:$0xf] %v1378
        %1411 = vst [vmem:[%s257 + $0x28] sm:$0xf] %v1379
        %1412 = vst [vmem:[%s257 + $0x2c] sm:$0xf] %v1380
        %1413 = vst [vmem:[%s257 + $0x30] sm:$0xf] %v1381
        %1414 = vst [vmem:[%s257 + $0x34] sm:$0xf] %v1382
        %1415 = vst [vmem:[%s257 + $0x38] sm:$0xf] %v1383
        %1416 = vst [vmem:[%s257 + $0x3c] sm:$0xf] %v1384
        %v1417 = vpack.c.bf16 %v1071, %v1067
        %v1418 = vpack.c.bf16 %v1081, %v1077
        %v1419 = vpack.c.bf16 %v1091, %v1087
        %v1420 = vpack.c.bf16 %v1101, %v1097
        %v1421 = vpack.c.bf16 %v1111, %v1107
        %v1422 = vpack.c.bf16 %v1121, %v1117
        %v1423 = vpack.c.bf16 %v1131, %v1127
        %v1424 = vpack.c.bf16 %v1141, %v1137
        %v1433 = vunpack.c.l.b16 %v1417
        %v1434 = vunpack.c.h.b16 %v1417
        %v1435 = vunpack.c.l.b16 %v1418
        %v1436 = vunpack.c.h.b16 %v1418
        %v1437 = vunpack.c.l.b16 %v1419
        %v1438 = vunpack.c.h.b16 %v1419
        %v1439 = vunpack.c.l.b16 %v1420
        %v1440 = vunpack.c.h.b16 %v1420
        %v1441 = vunpack.c.l.b16 %v1421
        %v1442 = vunpack.c.h.b16 %v1421
        %v1443 = vunpack.c.l.b16 %v1422
        %v1444 = vunpack.c.h.b16 %v1422
        %v1445 = vunpack.c.l.b16 %v1423
        %v1446 = vunpack.c.h.b16 %v1423
        %v1447 = vunpack.c.l.b16 %v1424
        %v1448 = vunpack.c.h.b16 %v1424
        %v1449 = vpack.c.b16 %v1433, %v1433
        %v1450 = vpack.c.b16 %v1434, %v1434
        %v1451 = vpack.c.b16 %v1435, %v1435
        %v1452 = vpack.c.b16 %v1436, %v1436
        %v1453 = vpack.c.b16 %v1437, %v1437
        %v1454 = vpack.c.b16 %v1438, %v1438
        %v1455 = vpack.c.b16 %v1439, %v1439
        %v1456 = vpack.c.b16 %v1440, %v1440
        %v1457 = vpack.c.b16 %v1441, %v1441
        %v1458 = vpack.c.b16 %v1442, %v1442
        %v1459 = vpack.c.b16 %v1443, %v1443
        %v1460 = vpack.c.b16 %v1444, %v1444
        %v1461 = vpack.c.b16 %v1445, %v1445
        %v1462 = vpack.c.b16 %v1446, %v1446
        %v1463 = vpack.c.b16 %v1447, %v1447
        %v1464 = vpack.c.b16 %v1448, %v1448
        %1481 = vst [vmem:[%s264] sm:$0xf] %v1449
        %1482 = vst [vmem:[%s264 + $0x4] sm:$0xf] %v1450
        %1483 = vst [vmem:[%s264 + $0x8] sm:$0xf] %v1451
        %1484 = vst [vmem:[%s264 + $0xc] sm:$0xf] %v1452
        %1485 = vst [vmem:[%s264 + $0x10] sm:$0xf] %v1453
        %1486 = vst [vmem:[%s264 + $0x14] sm:$0xf] %v1454
        %1487 = vst [vmem:[%s264 + $0x18] sm:$0xf] %v1455
        %1488 = vst [vmem:[%s264 + $0x1c] sm:$0xf] %v1456
        %1489 = vst [vmem:[%s264 + $0x20] sm:$0xf] %v1457
        %1490 = vst [vmem:[%s264 + $0x24] sm:$0xf] %v1458
        %1491 = vst [vmem:[%s264 + $0x28] sm:$0xf] %v1459
        %1492 = vst [vmem:[%s264 + $0x2c] sm:$0xf] %v1460
        %1493 = vst [vmem:[%s264 + $0x30] sm:$0xf] %v1461
        %1494 = vst [vmem:[%s264 + $0x34] sm:$0xf] %v1462
        %1495 = vst [vmem:[%s264 + $0x38] sm:$0xf] %v1463
        %1496 = vst [vmem:[%s264 + $0x3c] sm:$0xf] %v1464
        %v1497 = vpack.c.bf16 %v1278, %v1275
        %v1498 = vpack.c.bf16 %v1286, %v1283
        %v1499 = vpack.c.bf16 %v1294, %v1291
        %v1500 = vpack.c.bf16 %v1302, %v1299
        %v1501 = vpack.c.bf16 %v1310, %v1307
        %v1502 = vpack.c.bf16 %v1318, %v1315
        %v1503 = vpack.c.bf16 %v1326, %v1323
        %v1504 = vpack.c.bf16 %v1334, %v1331
        %v1513 = vunpack.c.l.b16 %v1497
        %v1514 = vunpack.c.h.b16 %v1497
        %v1515 = vunpack.c.l.b16 %v1498
        %v1516 = vunpack.c.h.b16 %v1498
        %v1517 = vunpack.c.l.b16 %v1499
        %v1518 = vunpack.c.h.b16 %v1499
        %v1519 = vunpack.c.l.b16 %v1500
        %v1520 = vunpack.c.h.b16 %v1500
        %v1521 = vunpack.c.l.b16 %v1501
        %v1522 = vunpack.c.h.b16 %v1501
        %v1523 = vunpack.c.l.b16 %v1502
        %v1524 = vunpack.c.h.b16 %v1502
        %v1525 = vunpack.c.l.b16 %v1503
        %v1526 = vunpack.c.h.b16 %v1503
        %v1527 = vunpack.c.l.b16 %v1504
        %v1528 = vunpack.c.h.b16 %v1504
        %v1529 = vpack.c.b16 %v1513, %v1513
        %v1530 = vpack.c.b16 %v1514, %v1514
        %v1531 = vpack.c.b16 %v1515, %v1515
        %v1532 = vpack.c.b16 %v1516, %v1516
        %v1533 = vpack.c.b16 %v1517, %v1517
        %v1534 = vpack.c.b16 %v1518, %v1518
        %v1535 = vpack.c.b16 %v1519, %v1519
        %v1536 = vpack.c.b16 %v1520, %v1520
        %v1537 = vpack.c.b16 %v1521, %v1521
        %v1538 = vpack.c.b16 %v1522, %v1522
        %v1539 = vpack.c.b16 %v1523, %v1523
        %v1540 = vpack.c.b16 %v1524, %v1524
        %v1541 = vpack.c.b16 %v1525, %v1525
        %v1542 = vpack.c.b16 %v1526, %v1526
        %v1543 = vpack.c.b16 %v1527, %v1527
        %v1544 = vpack.c.b16 %v1528, %v1528
        %1561 = vst [vmem:[%s271] sm:$0xf] %v1529
        %1562 = vst [vmem:[%s271 + $0x4] sm:$0xf] %v1530
        %1563 = vst [vmem:[%s271 + $0x8] sm:$0xf] %v1531
        %1564 = vst [vmem:[%s271 + $0xc] sm:$0xf] %v1532
        %1565 = vst [vmem:[%s271 + $0x10] sm:$0xf] %v1533
        %1566 = vst [vmem:[%s271 + $0x14] sm:$0xf] %v1534
        %1567 = vst [vmem:[%s271 + $0x18] sm:$0xf] %v1535
        %1568 = vst [vmem:[%s271 + $0x1c] sm:$0xf] %v1536
        %1569 = vst [vmem:[%s271 + $0x20] sm:$0xf] %v1537
        %1570 = vst [vmem:[%s271 + $0x24] sm:$0xf] %v1538
        %1571 = vst [vmem:[%s271 + $0x28] sm:$0xf] %v1539
        %1572 = vst [vmem:[%s271 + $0x2c] sm:$0xf] %v1540
        %1573 = vst [vmem:[%s271 + $0x30] sm:$0xf] %v1541
        %1574 = vst [vmem:[%s271 + $0x34] sm:$0xf] %v1542
        %1575 = vst [vmem:[%s271 + $0x38] sm:$0xf] %v1543
        %1576 = vst [vmem:[%s271 + $0x3c] sm:$0xf] %v1544
        %s1577 = sand.u32 %s97, 1
        %s1578 = scalar_lea.sflag [#allocation4], %s1577
        %s1579 = sand.u32 %s97, 1
        %s1580 = smul.addr %s1579, 64
        %s1581 = scalar_lea.vmem [#allocation7], %s1580
        %s1582 = sand.u32 %s26, 1
        %s1583 = scalar_lea.sflag [#allocation9], %s1582
        %s1584 = sand.u32 %s125, 1
        %s1585 = smul.addr %s1584, 64
        %s1586 = scalar_lea.vmem [#allocation8], %s1585
        %s1587 = sand.u32 %s26, 1
        %s1588 = scalar_lea.sflag [#allocation9], %s1587
        %s1589 = sand.u32 %s153, 1
        %s1590 = smul.addr %s1589, 64
        %s1591 = scalar_lea.vmem [#allocation10], %s1590
        // Predicated region
        $region37: #{tpu_custom_call.1} parent=27 // pred_check
          %p1592 = pneg %p107
        $region38: #{tpu_custom_call.1} parent=27 // pred_check_branch
          %1594 = sbr.rel (%p1592) target = $region40
        $region39: #{tpu_custom_call.1} parent=27 // pred_region
          %s1595 = smul.u32 16, %s31
          %s1597 = ssub.s32 1024, 1024
          %1598 = vsyncadd %s1578, %s1597
          %s1599 = smul.addr %s30, 16
          %s1600 = sadd.s32 %s1595, %s1599
          %s1601 = smul.addr %s1600, 64
          %s1602 = scalar_lea.hbm %s2, %s1601
          %s1603 = sshll.u32 %s1581, 4
          %s1604 = int_to_ptr.vmem [resolvable:$true] %s1603
          %1609 = dma.vmem_to_hbm [thread:$0]  %s1604, 1024, %s1602, %s1578, 64, 64, 4
        $region40: #{tpu_custom_call.1} parent=27 // pred_fallthru
          _
        // Predicated region
        $region41: #{tpu_custom_call.1} parent=27 // pred_check
          %p1610 = pneg %p135
        $region42: #{tpu_custom_call.1} parent=27 // pred_check_branch
          %1612 = sbr.rel (%p1610) target = $region44
        $region43: #{tpu_custom_call.1} parent=27 // pred_region
          %s1613 = smul.u32 16, %s31
          %s1615 = ssub.s32 1024, 1024
          %1616 = vsyncadd %s1583, %s1615
          %s1617 = smul.addr %s30, 16
          %s1618 = sadd.s32 %s1613, %s1617
          %s1619 = smul.addr %s1618, 64
          %s1620 = scalar_lea.hbm %s3, %s1619
          %s1621 = sshll.u32 %s1586, 4
          %s1622 = int_to_ptr.vmem [resolvable:$true] %s1621
          %1627 = dma.vmem_to_hbm [thread:$0]  %s1622, 1024, %s1620, %s1583, 64, 64, 4
        $region44: #{tpu_custom_call.1} parent=27 // pred_fallthru
          _
        // Predicated region
        $region45: #{tpu_custom_call.1} parent=27 // pred_check
          %p1628 = pneg %p163
        $region46: #{tpu_custom_call.1} parent=27 // pred_check_branch
          %1630 = sbr.rel (%p1628) target = $region48
        $region47: #{tpu_custom_call.1} parent=27 // pred_region
          %s1631 = smul.u32 16, %s31
          %s1633 = ssub.s32 1024, 1024
          %1634 = vsyncadd %s1588, %s1633
          %s1635 = smul.addr %s30, 16
          %s1636 = sadd.s32 %s1631, %s1635
          %s1637 = smul.addr %s1636, 64
          %s1638 = scalar_lea.hbm %s4, %s1637
          %s1639 = sshll.u32 %s1591, 4
          %s1640 = int_to_ptr.vmem [resolvable:$true] %s1639
          %1645 = dma.vmem_to_hbm [thread:$0]  %s1640, 1024, %s1638, %s1588, 64, 64, 4
        $region48: #{tpu_custom_call.1} parent=27 // pred_fallthru
          _
      $region28: #{tpu_custom_call.1} parent=5 // pred_fallthru
        _
      %p1646 = scmp.le.s32.totalorder 2, %s21
      // Predicated region
      $region49: #{tpu_custom_call.1} parent=5 // pred_check
        %p1647 = pneg %p1646
      $region50: #{tpu_custom_call.1} parent=5 // pred_check_branch
        %1649 = sbr.rel (%p1647) target = $region52
      $region51: #{tpu_custom_call.1} parent=5 // pred_region
        %s1650 = ssub.s32 %s21, 2
        // Predicated region
        $region53: #{tpu_custom_call.1} parent=51 // pred_check
          %p1651 = pneg %p113
        $region54: #{tpu_custom_call.1} parent=51 // pred_check_branch
          %1653 = sbr.rel (%p1651) target = $region56
        $region55: #{tpu_custom_call.1} parent=51 // pred_region
          %s1654 = sand.u32 %s98, 1
          %s1655 = scalar_lea.sflag [#allocation4], %s1654
          %s1656 = sand.u32 %s98, 1
          %s1657 = smul.addr %s1656, 64
          %s1658 = scalar_lea.vmem [#allocation7], %s1657
          %1659 = dma.done %s1655, 1024
        $region56: #{tpu_custom_call.1} parent=51 // pred_fallthru
          _
        // Predicated region
        $region57: #{tpu_custom_call.1} parent=51 // pred_check
          %p1660 = pneg %p141
        $region58: #{tpu_custom_call.1} parent=51 // pred_check_branch
          %1662 = sbr.rel (%p1660) target = $region60
        $region59: #{tpu_custom_call.1} parent=51 // pred_region
          %s1663 = sand.u32 %s27, 1
          %s1664 = scalar_lea.sflag [#allocation9], %s1663
          %s1665 = sand.u32 %s126, 1
          %s1666 = smul.addr %s1665, 64
          %s1667 = scalar_lea.vmem [#allocation8], %s1666
          %1668 = dma.done %s1664, 1024
        $region60: #{tpu_custom_call.1} parent=51 // pred_fallthru
          _
        // Predicated region
        $region61: #{tpu_custom_call.1} parent=51 // pred_check
          %p1669 = pneg %p169
        $region62: #{tpu_custom_call.1} parent=51 // pred_check_branch
          %1671 = sbr.rel (%p1669) target = $region64
        $region63: #{tpu_custom_call.1} parent=51 // pred_region
          %s1672 = sand.u32 %s27, 1
          %s1673 = scalar_lea.sflag [#allocation9], %s1672
          %s1674 = sand.u32 %s154, 1
          %s1675 = smul.addr %s1674, 64
          %s1676 = scalar_lea.vmem [#allocation10], %s1675
          %1677 = dma.done %s1673, 1024
        $region64: #{tpu_custom_call.1} parent=51 // pred_fallthru
          _
      $region52: #{tpu_custom_call.1} parent=5 // pred_fallthru
        _
    $region6: #{tpu_custom_call.1} parent=1 // loop_footer
      %s25 = sadd.s32 1, %s21
    $region7: #{tpu_custom_call.1} parent=1 // loop_footer_branch
      %20 = sbr.rel target = $region3
    $region8: #{tpu_custom_call.1} parent=1 // loop_exit
      _
    %1678 = vsyncpa [#allocation3], 1
    %s1679 = scalar_lea.sflag [#allocation3], 1
    %1680 = vsyncpa %s1679, 1
    %1681 = vsyncpa [#allocation6], 1
    %1682 = vsyncpa [#allocation4], 1
    %s1683 = scalar_lea.sflag [#allocation4], 1
    %1684 = vsyncpa %s1683, 1
    %1685 = vsyncpa [#allocation9], 1
    %s1686 = scalar_lea.sflag [#allocation9], 1
    %1687 = vsyncpa %s1686, 1

</llo_original>
